<compile_context>
chip_gen: v7x
topology: tpu7x:2x2x1
jax: 0.10.0
libtpu: 0.0.40
codegen_flags: <defaults>
</compile_context>

<pallas_src>
import functools

import jax
import jax.numpy as jnp
from jax.experimental import pallas as pl
from jax.experimental.pallas import tpu as pltpu


def _layer_norm(x, gamma, beta, eps=1e-5):
    mean = jnp.mean(x, axis=-1, keepdims=True)
    var = jnp.mean((x - mean) ** 2, axis=-1, keepdims=True)
    return (x - mean) * jax.lax.rsqrt(var + eps) * gamma + beta


def tran_enc_kernel(H, hd,
                    x_ref, kbias_ref, qmask_ref,
                    wqkv_ref, bqkv_ref, wo_ref, bo_ref, ln1g_ref, ln1b_ref,
                    w1_ref, b1_ref, w2_ref, b2_ref, ln2g_ref, ln2b_ref,
                    out_ref):
    """One grid step = (batch block, one encoder layer)."""
    layer = pl.program_id(1)
    Bb, L, D = x_ref.shape
    hid = H * hd
    R = Bb * L

    # Activation carried resident in the output VMEM block across the layer axis.
    @pl.when(layer == 0)
    def _():
        out_ref[...] = x_ref[...]

    x = out_ref[...].reshape(R, D)              # (R, D) f32 activation
    kbias = kbias_ref[...]                      # (Bb, 1, L) additive mask: 0 valid, -1e30 pad
    qmask = qmask_ref[...].reshape(R, 1)        # (R, 1)     0/1 query mask

    xb = x.astype(jnp.bfloat16)

    # ---- fused QKV projection (1/sqrt(hd) folded into the Q weights/bias) ----
    qkv = jnp.dot(xb, wqkv_ref[0],
                  preferred_element_type=jnp.float32) + bqkv_ref[0]   # (R, 3*hid) f32
    qkv3 = qkv.reshape(Bb, L, 3 * hid)          # leading-dim split (free)

    # ---- attention: static head loop of batch-batched dot_generals ----
    # (no jnp.stack / per-(b,h) slicing; mask applied as one broadcast add)
    head_outs = []
    for h in range(H):
        q_h = qkv3[:, :, h * hd:(h + 1) * hd].astype(jnp.bfloat16)              # (Bb, L, hd)
        k_h = qkv3[:, :, hid + h * hd: hid + (h + 1) * hd].astype(jnp.bfloat16)
        v_h = qkv3[:, :, 2 * hid + h * hd: 2 * hid + (h + 1) * hd].astype(jnp.bfloat16)

        s = jax.lax.dot_general(q_h, k_h, (((2,), (2,)), ((0,), (0,))),
                                preferred_element_type=jnp.float32)    # (Bb, L, L)
        s = s + kbias                                                  # key-padding mask
        s = s - jnp.max(s, axis=-1, keepdims=True)
        e = jnp.exp(s)
        p = e / jnp.sum(e, axis=-1, keepdims=True)                     # exact softmax (f32)

        o_h = jax.lax.dot_general(p.astype(jnp.bfloat16), v_h,
                                  (((2,), (1,)), ((0,), (0,))),
                                  preferred_element_type=jnp.float32)  # (Bb, L, hd)
        head_outs.append(o_h)

    # merge heads with ONE lane concat -> (R, hid) for a single output projection
    o_cat = jnp.concatenate(head_outs, axis=-1).reshape(R, hid)

    attn = jnp.dot(o_cat.astype(jnp.bfloat16), wo_ref[0],
                   preferred_element_type=jnp.float32) + bo_ref[0]     # (R, D)
    attn = attn * qmask
    # dropout rate 0.0 -> identity

    # ---- residual + LayerNorm (ResMHA) ----
    y = _layer_norm(x + attn, ln1g_ref[0], ln1b_ref[0])

    # ---- feed forward: Linear -> LeakyReLU(0.01) -> Linear ----
    h1 = jnp.dot(y.astype(jnp.bfloat16), w1_ref[0],
                 preferred_element_type=jnp.float32) + b1_ref[0]       # (R, Fh)
    h1 = jnp.where(h1 > 0, h1, 0.01 * h1)
    h2 = jnp.dot(h1.astype(jnp.bfloat16), w2_ref[0],
                 preferred_element_type=jnp.float32) + b2_ref[0]       # (R, D)
    h2 = h2 * qmask

    # ---- residual + LayerNorm (ResFF) ----
    out_ref[...] = _layer_norm(y + h2, ln2g_ref[0], ln2b_ref[0]).reshape(Bb, L, D)


def _pick_block_b(B, L, block_b=None):
    """Largest batch block that keeps >=2 batch grid steps (v7x megacore)
    and bounds rows per block (VMEM guard on the (rows, Fh) f32 intermediate)."""
    if block_b is not None:
        bb = max(1, min(block_b, B))
        while B % bb:
            bb -= 1
        return bb
    divisors = [d for d in range(1, B + 1) if B % d == 0]
    good = [d for d in divisors if B // d >= 2 and d * L <= 512]
    return good[-1] if good else divisors[0]


def _vmem_limit_bytes():
    """~3/4 of physical VMEM: ~96 MiB on v5e/v6e (128 MiB), ~48 MiB on v7x (64 MiB)."""
    try:
        cap = pltpu.get_tpu_info().vmem_capacity_bytes
    except Exception:
        cap = 64 * 1024 * 1024          # conservative fallback (v7x-safe)
    return int(min(cap * 3 // 4, 100 * 1024 * 1024))


def transformer_encoder(q, mask, params, *, block_b=None):
    """Runs ALL encoder layers in one fused pallas_call.

    q: (B, L, D) f32, mask: (B, L) of 0/1.
    """
    B, L, D = q.shape
    H, hd = params["H"], params["hd"]
    hid = H * hd
    n_layers = params["wqkv"].shape[0]
    Fh = params["w1"].shape[2]

    bb = _pick_block_b(B, L, block_b)

    # Layer-invariant mask tensors, computed ONCE outside the kernel:
    maskf = mask.astype(jnp.float32)
    kbias = ((maskf - 1.0) * 1e30)[:, None, :]     # (B, 1, L) additive score bias
    qmask = maskf[:, :, None]                      # (B, L, 1) query zeroing mask

    kern = functools.partial(tran_enc_kernel, H, hd)

    def wspec(shape):                   # per-layer weight block, indexed by the layer axis
        return pl.BlockSpec((1,) + shape, lambda b, l: (l, 0, 0))

    grid_spec = pltpu.PrefetchScalarGridSpec(
        num_scalar_prefetch=0,
        grid=(B // bb, n_layers),       # layers innermost -> activation carried in VMEM
        in_specs=[
            pl.BlockSpec((bb, L, D), lambda b, l: (b, 0, 0)),   # x (fetched once / batch block)
            pl.BlockSpec((bb, 1, L), lambda b, l: (b, 0, 0)),   # additive key-mask bias
            pl.BlockSpec((bb, L, 1), lambda b, l: (b, 0, 0)),   # query mask column
            wspec((D, 3 * hid)), wspec((1, 3 * hid)),           # fused QKV
            wspec((hid, D)), wspec((1, D)),                     # output projection
            wspec((1, D)), wspec((1, D)),                       # LN1
            wspec((D, Fh)), wspec((1, Fh)),                     # FF in
            wspec((Fh, D)), wspec((1, D)),                      # FF out
            wspec((1, D)), wspec((1, D)),                       # LN2
        ],
        out_specs=pl.BlockSpec((bb, L, D), lambda b, l: (b, 0, 0)),
    )
    return pl.pallas_call(
        kern,
        out_shape=jax.ShapeDtypeStruct((B, L, D), jnp.float32),
        grid_spec=grid_spec,
        compiler_params=pltpu.CompilerParams(
            dimension_semantics=("parallel", "arbitrary"),
            vmem_limit_bytes=_vmem_limit_bytes(),
        ),
    )(q.astype(jnp.float32), kbias, qmask,
      params["wqkv"], params["bqkv"], params["wo"], params["bo"],
      params["ln1g"], params["ln1b"], params["w1"], params["b1"],
      params["w2"], params["b2"], params["ln2g"], params["ln2b"])


def init_params(key, layer_num, D, H, hd, Fh):
    """Deterministic synthetic weights, stacked per layer in kernel layout."""
    hid = H * hd
    scale = float(hd) ** -0.5
    names = ["wqkv", "bqkv", "wo", "bo", "ln1g", "ln1b",
             "w1", "b1", "w2", "b2", "ln2g", "ln2b"]
    stacks = {k: [] for k in names}
    for i in range(layer_num):
        ks = jax.random.split(jax.random.fold_in(key, i), 12)
        w = lambda k, s: (0.1 * jax.random.normal(k, s)).astype(jnp.float32)
        Wq, bq = w(ks[0], (hid, D)), w(ks[1], (hid,))
        Wk, bk = w(ks[2], (hid, D)), w(ks[3], (hid,))
        Wv, bv = w(ks[4], (hid, D)), w(ks[5], (hid,))
        Wo, bo = w(ks[6], (D, hid)), w(ks[7], (D,))
        W1, b1 = w(ks[8], (Fh, D)), w(ks[9], (Fh,))
        W2, b2 = w(ks[10], (D, Fh)), w(ks[11], (D,))
        # conv1d(k=1) projections == linear layers; fold 1/sqrt(hd) into Q.
        stacks["wqkv"].append(jnp.concatenate([Wq.T * scale, Wk.T, Wv.T], axis=1))  # (D, 3*hid)
        stacks["bqkv"].append(jnp.concatenate([bq * scale, bk, bv])[None, :])       # (1, 3*hid)
        stacks["wo"].append(Wo.T)                                                   # (hid, D)
        stacks["bo"].append(bo[None, :])
        stacks["ln1g"].append(jnp.ones((1, D), jnp.float32))
        stacks["ln1b"].append(jnp.zeros((1, D), jnp.float32))
        stacks["w1"].append(W1.T)                                                   # (D, Fh)
        stacks["b1"].append(b1[None, :])
        stacks["w2"].append(W2.T)                                                   # (Fh, D)
        stacks["b2"].append(b2[None, :])
        stacks["ln2g"].append(jnp.ones((1, D), jnp.float32))
        stacks["ln2b"].append(jnp.zeros((1, D), jnp.float32))
    params = {k: jnp.stack(v, axis=0) for k, v in stacks.items()}
    # MXU operands in bf16 (halves weight DMA / VMEM); biases + LN params stay f32.
    # (Production: int8 on v5e/v6e, fp8 on v7x would halve weight bytes again.)
    for k in ("wqkv", "wo", "w1", "w2"):
        params[k] = params[k].astype(jnp.bfloat16)
    params["H"], params["hd"] = H, hd
    return params


def tran_enc(query, params, query_mask=None, pad_idx=0, block_b=None):
    """TranEnc.forward: query (B, L, D)."""
    B, L, D = query.shape
    flag = 0
    if query_mask is None:
        flag = 1
        # Data-dependent length trimming (mirrors the PyTorch module).
        # TODO(synk): int(jnp.max(...)) forces a host sync -> this path is not jittable.
        nonzero_rows = jnp.sign(jnp.sum(jnp.abs(query), axis=-1))          # (B, L)
        batch_max_len = int(jnp.max(jnp.sum(nonzero_rows, axis=-1)))
        query = query[:, :batch_max_len, :]
        query_mask = jnp.sign(jnp.sum(jnp.abs(query), axis=-1))
    q = query.astype(jnp.float32)
    m = query_mask.astype(jnp.float32)
    q = transformer_encoder(q, m, params, block_b=block_b)
    if flag == 1:
        q = q * m[:, :, None]
        pad_len = L - q.shape[1]
        if pad_len > 0:
            q = jnp.pad(q, ((0, 0), (0, pad_len), (0, 0)),
                        constant_values=float(pad_idx))
    return q


if __name__ == "__main__":
    B, L, D = 4, 8, 32          # batch, seq, query_dims
    H, hd, Fh = 4, 8, 64        # head_num, head_dims, ff_hid_dims
    layer_num = 2

    key = jax.random.PRNGKey(0)
    kx, kp = jax.random.split(key)
    x = jax.random.normal(kx, (B, L, D), jnp.float32)
    params = init_params(kp, layer_num, D, H, hd, Fh)

    out = tran_enc(x, params)           # query_mask=None path, like the PyTorch default
    out = jax.block_until_ready(out)
    assert out.shape == (B, L, D), out.shape
    assert bool(jnp.all(jnp.isfinite(out)))
    print("KERNEL_OK")
</pallas_src>

<mosaic_0001>
module attributes {stable_mosaic.version = 11 : i64} {
  func.func @tran_enc_kernel(%arg0: i32, %arg1: i32, %arg2: memref<2x8x32xf32, #tpu.memory_space<vmem>>, %arg3: memref<2x1x8xf32, #tpu.memory_space<vmem>>, %arg4: memref<2x8x1xf32, #tpu.memory_space<vmem>>, %arg5: memref<1x32x96xbf16, #tpu.memory_space<vmem>>, %arg6: memref<1x1x96xf32, #tpu.memory_space<vmem>>, %arg7: memref<1x32x32xbf16, #tpu.memory_space<vmem>>, %arg8: memref<1x1x32xf32, #tpu.memory_space<vmem>>, %arg9: memref<1x1x32xf32, #tpu.memory_space<vmem>>, %arg10: memref<1x1x32xf32, #tpu.memory_space<vmem>>, %arg11: memref<1x32x64xbf16, #tpu.memory_space<vmem>>, %arg12: memref<1x1x64xf32, #tpu.memory_space<vmem>>, %arg13: memref<1x64x32xbf16, #tpu.memory_space<vmem>>, %arg14: memref<1x1x32xf32, #tpu.memory_space<vmem>>, %arg15: memref<1x1x32xf32, #tpu.memory_space<vmem>>, %arg16: memref<1x1x32xf32, #tpu.memory_space<vmem>>, %arg17: memref<2x8x32xf32, #tpu.memory_space<vmem>>) attributes {dimension_semantics = [#tpu.dimension_semantics<parallel>, #tpu.dimension_semantics<arbitrary>], iteration_bounds = array<i64: 2, 2>, scalar_prefetch = 0 : i64, scratch_operands = 0 : i64, tpu.core_type = #tpu.core_type<tc>, window_params = [{transform_indices = @transform_0, window_bounds = array<i64: 2, 8, 32>}, {transform_indices = @transform_1, window_bounds = array<i64: 2, 1, 8>}, {transform_indices = @transform_2, window_bounds = array<i64: 2, 8, 1>}, {transform_indices = @transform_3, window_bounds = array<i64: 1, 32, 96>}, {transform_indices = @transform_4, window_bounds = array<i64: 1, 1, 96>}, {transform_indices = @transform_5, window_bounds = array<i64: 1, 32, 32>}, {transform_indices = @transform_6, window_bounds = array<i64: 1, 1, 32>}, {transform_indices = @transform_7, window_bounds = array<i64: 1, 1, 32>}, {transform_indices = @transform_8, window_bounds = array<i64: 1, 1, 32>}, {transform_indices = @transform_9, window_bounds = array<i64: 1, 32, 64>}, {transform_indices = @transform_10, window_bounds = array<i64: 1, 1, 64>}, {transform_indices = @transform_11, window_bounds = array<i64: 1, 64, 32>}, {transform_indices = @transform_12, window_bounds = array<i64: 1, 1, 32>}, {transform_indices = @transform_13, window_bounds = array<i64: 1, 1, 32>}, {transform_indices = @transform_14, window_bounds = array<i64: 1, 1, 32>}, {transform_indices = @transform_15, window_bounds = array<i64: 2, 8, 32>}]} {
    %c0_i32 = arith.constant 0 : i32
    %0 = arith.cmpi eq, %arg1, %c0_i32 : i32
    %1 = arith.extui %0 : i1 to i32
    %c0_i32_0 = arith.constant 0 : i32
    %2 = arith.cmpi ne, %1, %c0_i32_0 : i32
    scf.if %2 {
      %c0_79 = arith.constant 0 : index
      %c0_80 = arith.constant 0 : index
      %c0_81 = arith.constant 0 : index
      %188 = vector.load %arg2[%c0_79, %c0_80, %c0_81] : memref<2x8x32xf32, #tpu.memory_space<vmem>>, vector<2x8x32xf32>
      %c0_82 = arith.constant 0 : index
      %c0_83 = arith.constant 0 : index
      %c0_84 = arith.constant 0 : index
      %189 = vector.load %arg17[%c0_82, %c0_83, %c0_84] : memref<2x8x32xf32, #tpu.memory_space<vmem>>, vector<2x8x32xf32>
      tpu.vector_store %arg17[%c0_82, %c0_83, %c0_84], %188 {strides = array<i32>} : memref<2x8x32xf32, #tpu.memory_space<vmem>>, vector<2x8x32xf32>,
    } else {
    }
    %c0 = arith.constant 0 : index
    %c0_1 = arith.constant 0 : index
    %c0_2 = arith.constant 0 : index
    %3 = vector.load %arg17[%c0, %c0_1, %c0_2] : memref<2x8x32xf32, #tpu.memory_space<vmem>>, vector<2x8x32xf32>
    %4 = vector.shape_cast %3 : vector<2x8x32xf32> to vector<16x32xf32>
    %c0_3 = arith.constant 0 : index
    %c0_4 = arith.constant 0 : index
    %c0_5 = arith.constant 0 : index
    %5 = vector.load %arg3[%c0_3, %c0_4, %c0_5] : memref<2x1x8xf32, #tpu.memory_space<vmem>>, vector<2x1x8xf32>
    %c0_6 = arith.constant 0 : index
    %c0_7 = arith.constant 0 : index
    %c0_8 = arith.constant 0 : index
    %6 = vector.load %arg4[%c0_6, %c0_7, %c0_8] : memref<2x8x1xf32, #tpu.memory_space<vmem>>, vector<2x8x1xf32>
    %7 = vector.shape_cast %6 : vector<2x8x1xf32> to vector<16x1xf32>
    %8 = arith.truncf %4 : vector<16x32xf32> to vector<16x32xbf16>
    %c0_9 = arith.constant 0 : index
    %c0_10 = arith.constant 0 : index
    %c0_11 = arith.constant 0 : index
    %9 = vector.load %arg5[%c0_9, %c0_10, %c0_11] : memref<1x32x96xbf16, #tpu.memory_space<vmem>>, vector<1x32x96xbf16>
    %10 = vector.shape_cast %9 : vector<1x32x96xbf16> to vector<32x96xbf16>
    %cst = arith.constant dense<0.000000e+00> : vector<16x96xf32>
    %11 = tpu.matmul %8, %10, %cst {dimension_numbers = #tpu.dot_dimension_numbers<[1], [0], [0], [1], [0, 0, 1, 1], [], []>} : vector<16x32xbf16>, vector<32x96xbf16>, vector<16x96xf32> -> vector<16x96xf32>
    %c0_12 = arith.constant 0 : index
    %c0_13 = arith.constant 0 : index
    %c0_14 = arith.constant 0 : index
    %12 = vector.load %arg6[%c0_12, %c0_13, %c0_14] : memref<1x1x96xf32, #tpu.memory_space<vmem>>, vector<1x1x96xf32>
    %13 = vector.shape_cast %12 : vector<1x1x96xf32> to vector<1x96xf32>
    %14 = vector.broadcast %13 : vector<1x96xf32> to vector<16x96xf32>
    %15 = arith.addf %11, %14 : vector<16x96xf32>
    %16 = vector.shape_cast %15 : vector<16x96xf32> to vector<2x8x96xf32>
    %17 = vector.extract_strided_slice %16 {offsets = [0, 0, 0], sizes = [2, 8, 8], strides = [1, 1, 1]} : vector<2x8x96xf32> to vector<2x8x8xf32>
    %18 = arith.truncf %17 : vector<2x8x8xf32> to vector<2x8x8xbf16>
    %19 = vector.extract_strided_slice %16 {offsets = [0, 0, 32], sizes = [2, 8, 8], strides = [1, 1, 1]} : vector<2x8x96xf32> to vector<2x8x8xf32>
    %20 = arith.truncf %19 : vector<2x8x8xf32> to vector<2x8x8xbf16>
    %21 = vector.extract_strided_slice %16 {offsets = [0, 0, 64], sizes = [2, 8, 8], strides = [1, 1, 1]} : vector<2x8x96xf32> to vector<2x8x8xf32>
    %22 = arith.truncf %21 : vector<2x8x8xf32> to vector<2x8x8xbf16>
    %cst_15 = arith.constant dense<0.000000e+00> : vector<2x8x8xf32>
    %23 = tpu.matmul %18, %20, %cst_15 {dimension_numbers = #tpu.dot_dimension_numbers<[2], [2], [1], [1], [0, 0, 0, 1, 1, 1], [0], [0]>} : vector<2x8x8xbf16>, vector<2x8x8xbf16>, vector<2x8x8xf32> -> vector<2x8x8xf32>
    %24 = vector.broadcast %5 : vector<2x1x8xf32> to vector<2x8x8xf32>
    %25 = arith.addf %23, %24 : vector<2x8x8xf32>
    %cst_16 = arith.constant dense<0xFF800000> : vector<2x8xf32>
    %26 = vector.multi_reduction <maximumf>, %25, %cst_16 [2] : vector<2x8x8xf32> to vector<2x8xf32>
    %27 = vector.shape_cast %26 : vector<2x8xf32> to vector<2x8x1xf32>
    %28 = vector.broadcast %27 : vector<2x8x1xf32> to vector<2x8x8xf32>
    %29 = arith.subf %25, %28 : vector<2x8x8xf32>
    %30 = math.exp %29 : vector<2x8x8xf32>
    %cst_17 = arith.constant dense<0.000000e+00> : vector<2x8xf32>
    %31 = vector.multi_reduction <add>, %30, %cst_17 [2] : vector<2x8x8xf32> to vector<2x8xf32>
    %32 = vector.shape_cast %31 : vector<2x8xf32> to vector<2x8x1xf32>
    %33 = vector.broadcast %32 : vector<2x8x1xf32> to vector<2x8x8xf32>
    %34 = arith.divf %30, %33 : vector<2x8x8xf32>
    %35 = arith.truncf %34 : vector<2x8x8xf32> to vector<2x8x8xbf16>
    %cst_18 = arith.constant dense<0.000000e+00> : vector<2x8x8xf32>
    %36 = tpu.matmul %35, %22, %cst_18 {dimension_numbers = #tpu.dot_dimension_numbers<[2], [1], [1], [2], [0, 0, 0, 1, 1, 2], [0], [0]>} : vector<2x8x8xbf16>, vector<2x8x8xbf16>, vector<2x8x8xf32> -> vector<2x8x8xf32>
    %37 = vector.extract_strided_slice %16 {offsets = [0, 0, 8], sizes = [2, 8, 8], strides = [1, 1, 1]} : vector<2x8x96xf32> to vector<2x8x8xf32>
    %38 = arith.truncf %37 : vector<2x8x8xf32> to vector<2x8x8xbf16>
    %39 = vector.extract_strided_slice %16 {offsets = [0, 0, 40], sizes = [2, 8, 8], strides = [1, 1, 1]} : vector<2x8x96xf32> to vector<2x8x8xf32>
    %40 = arith.truncf %39 : vector<2x8x8xf32> to vector<2x8x8xbf16>
    %41 = vector.extract_strided_slice %16 {offsets = [0, 0, 72], sizes = [2, 8, 8], strides = [1, 1, 1]} : vector<2x8x96xf32> to vector<2x8x8xf32>
    %42 = arith.truncf %41 : vector<2x8x8xf32> to vector<2x8x8xbf16>
    %cst_19 = arith.constant dense<0.000000e+00> : vector<2x8x8xf32>
    %43 = tpu.matmul %38, %40, %cst_19 {dimension_numbers = #tpu.dot_dimension_numbers<[2], [2], [1], [1], [0, 0, 0, 1, 1, 1], [0], [0]>} : vector<2x8x8xbf16>, vector<2x8x8xbf16>, vector<2x8x8xf32> -> vector<2x8x8xf32>
    %44 = vector.broadcast %5 : vector<2x1x8xf32> to vector<2x8x8xf32>
    %45 = arith.addf %43, %44 : vector<2x8x8xf32>
    %cst_20 = arith.constant dense<0xFF800000> : vector<2x8xf32>
    %46 = vector.multi_reduction <maximumf>, %45, %cst_20 [2] : vector<2x8x8xf32> to vector<2x8xf32>
    %47 = vector.shape_cast %46 : vector<2x8xf32> to vector<2x8x1xf32>
    %48 = vector.broadcast %47 : vector<2x8x1xf32> to vector<2x8x8xf32>
    %49 = arith.subf %45, %48 : vector<2x8x8xf32>
    %50 = math.exp %49 : vector<2x8x8xf32>
    %cst_21 = arith.constant dense<0.000000e+00> : vector<2x8xf32>
    %51 = vector.multi_reduction <add>, %50, %cst_21 [2] : vector<2x8x8xf32> to vector<2x8xf32>
    %52 = vector.shape_cast %51 : vector<2x8xf32> to vector<2x8x1xf32>
    %53 = vector.broadcast %52 : vector<2x8x1xf32> to vector<2x8x8xf32>
    %54 = arith.divf %50, %53 : vector<2x8x8xf32>
    %55 = arith.truncf %54 : vector<2x8x8xf32> to vector<2x8x8xbf16>
    %cst_22 = arith.constant dense<0.000000e+00> : vector<2x8x8xf32>
    %56 = tpu.matmul %55, %42, %cst_22 {dimension_numbers = #tpu.dot_dimension_numbers<[2], [1], [1], [2], [0, 0, 0, 1, 1, 2], [0], [0]>} : vector<2x8x8xbf16>, vector<2x8x8xbf16>, vector<2x8x8xf32> -> vector<2x8x8xf32>
    %57 = vector.extract_strided_slice %16 {offsets = [0, 0, 16], sizes = [2, 8, 8], strides = [1, 1, 1]} : vector<2x8x96xf32> to vector<2x8x8xf32>
    %58 = arith.truncf %57 : vector<2x8x8xf32> to vector<2x8x8xbf16>
    %59 = vector.extract_strided_slice %16 {offsets = [0, 0, 48], sizes = [2, 8, 8], strides = [1, 1, 1]} : vector<2x8x96xf32> to vector<2x8x8xf32>
    %60 = arith.truncf %59 : vector<2x8x8xf32> to vector<2x8x8xbf16>
    %61 = vector.extract_strided_slice %16 {offsets = [0, 0, 80], sizes = [2, 8, 8], strides = [1, 1, 1]} : vector<2x8x96xf32> to vector<2x8x8xf32>
    %62 = arith.truncf %61 : vector<2x8x8xf32> to vector<2x8x8xbf16>
    %cst_23 = arith.constant dense<0.000000e+00> : vector<2x8x8xf32>
    %63 = tpu.matmul %58, %60, %cst_23 {dimension_numbers = #tpu.dot_dimension_numbers<[2], [2], [1], [1], [0, 0, 0, 1, 1, 1], [0], [0]>} : vector<2x8x8xbf16>, vector<2x8x8xbf16>, vector<2x8x8xf32> -> vector<2x8x8xf32>
    %64 = vector.broadcast %5 : vector<2x1x8xf32> to vector<2x8x8xf32>
    %65 = arith.addf %63, %64 : vector<2x8x8xf32>
    %cst_24 = arith.constant dense<0xFF800000> : vector<2x8xf32>
    %66 = vector.multi_reduction <maximumf>, %65, %cst_24 [2] : vector<2x8x8xf32> to vector<2x8xf32>
    %67 = vector.shape_cast %66 : vector<2x8xf32> to vector<2x8x1xf32>
    %68 = vector.broadcast %67 : vector<2x8x1xf32> to vector<2x8x8xf32>
    %69 = arith.subf %65, %68 : vector<2x8x8xf32>
    %70 = math.exp %69 : vector<2x8x8xf32>
    %cst_25 = arith.constant dense<0.000000e+00> : vector<2x8xf32>
    %71 = vector.multi_reduction <add>, %70, %cst_25 [2] : vector<2x8x8xf32> to vector<2x8xf32>
    %72 = vector.shape_cast %71 : vector<2x8xf32> to vector<2x8x1xf32>
    %73 = vector.broadcast %72 : vector<2x8x1xf32> to vector<2x8x8xf32>
    %74 = arith.divf %70, %73 : vector<2x8x8xf32>
    %75 = arith.truncf %74 : vector<2x8x8xf32> to vector<2x8x8xbf16>
    %cst_26 = arith.constant dense<0.000000e+00> : vector<2x8x8xf32>
    %76 = tpu.matmul %75, %62, %cst_26 {dimension_numbers = #tpu.dot_dimension_numbers<[2], [1], [1], [2], [0, 0, 0, 1, 1, 2], [0], [0]>} : vector<2x8x8xbf16>, vector<2x8x8xbf16>, vector<2x8x8xf32> -> vector<2x8x8xf32>
    %77 = vector.extract_strided_slice %16 {offsets = [0, 0, 24], sizes = [2, 8, 8], strides = [1, 1, 1]} : vector<2x8x96xf32> to vector<2x8x8xf32>
    %78 = arith.truncf %77 : vector<2x8x8xf32> to vector<2x8x8xbf16>
    %79 = vector.extract_strided_slice %16 {offsets = [0, 0, 56], sizes = [2, 8, 8], strides = [1, 1, 1]} : vector<2x8x96xf32> to vector<2x8x8xf32>
    %80 = arith.truncf %79 : vector<2x8x8xf32> to vector<2x8x8xbf16>
    %81 = vector.extract_strided_slice %16 {offsets = [0, 0, 88], sizes = [2, 8, 8], strides = [1, 1, 1]} : vector<2x8x96xf32> to vector<2x8x8xf32>
    %82 = arith.truncf %81 : vector<2x8x8xf32> to vector<2x8x8xbf16>
    %cst_27 = arith.constant dense<0.000000e+00> : vector<2x8x8xf32>
    %83 = tpu.matmul %78, %80, %cst_27 {dimension_numbers = #tpu.dot_dimension_numbers<[2], [2], [1], [1], [0, 0, 0, 1, 1, 1], [0], [0]>} : vector<2x8x8xbf16>, vector<2x8x8xbf16>, vector<2x8x8xf32> -> vector<2x8x8xf32>
    %84 = vector.broadcast %5 : vector<2x1x8xf32> to vector<2x8x8xf32>
    %85 = arith.addf %83, %84 : vector<2x8x8xf32>
    %cst_28 = arith.constant dense<0xFF800000> : vector<2x8xf32>
    %86 = vector.multi_reduction <maximumf>, %85, %cst_28 [2] : vector<2x8x8xf32> to vector<2x8xf32>
    %87 = vector.shape_cast %86 : vector<2x8xf32> to vector<2x8x1xf32>
    %88 = vector.broadcast %87 : vector<2x8x1xf32> to vector<2x8x8xf32>
    %89 = arith.subf %85, %88 : vector<2x8x8xf32>
    %90 = math.exp %89 : vector<2x8x8xf32>
    %cst_29 = arith.constant dense<0.000000e+00> : vector<2x8xf32>
    %91 = vector.multi_reduction <add>, %90, %cst_29 [2] : vector<2x8x8xf32> to vector<2x8xf32>
    %92 = vector.shape_cast %91 : vector<2x8xf32> to vector<2x8x1xf32>
    %93 = vector.broadcast %92 : vector<2x8x1xf32> to vector<2x8x8xf32>
    %94 = arith.divf %90, %93 : vector<2x8x8xf32>
    %95 = arith.truncf %94 : vector<2x8x8xf32> to vector<2x8x8xbf16>
    %cst_30 = arith.constant dense<0.000000e+00> : vector<2x8x8xf32>
    %96 = tpu.matmul %95, %82, %cst_30 {dimension_numbers = #tpu.dot_dimension_numbers<[2], [1], [1], [2], [0, 0, 0, 1, 1, 2], [0], [0]>} : vector<2x8x8xbf16>, vector<2x8x8xbf16>, vector<2x8x8xf32> -> vector<2x8x8xf32>
    %97 = tpu.concatenate %36, %56, %76, %96 in 2 : vector<2x8x8xf32>, vector<2x8x8xf32>, vector<2x8x8xf32>, vector<2x8x8xf32> -> vector<2x8x32xf32>
    %98 = vector.shape_cast %97 : vector<2x8x32xf32> to vector<16x32xf32>
    %99 = arith.truncf %98 : vector<16x32xf32> to vector<16x32xbf16>
    %c0_31 = arith.constant 0 : index
    %c0_32 = arith.constant 0 : index
    %c0_33 = arith.constant 0 : index
    %100 = vector.load %arg7[%c0_31, %c0_32, %c0_33] : memref<1x32x32xbf16, #tpu.memory_space<vmem>>, vector<1x32x32xbf16>
    %101 = vector.shape_cast %100 : vector<1x32x32xbf16> to vector<32x32xbf16>
    %cst_34 = arith.constant dense<0.000000e+00> : vector<16x32xf32>
    %102 = tpu.matmul %99, %101, %cst_34 {dimension_numbers = #tpu.dot_dimension_numbers<[1], [0], [0], [1], [0, 0, 1, 1], [], []>} : vector<16x32xbf16>, vector<32x32xbf16>, vector<16x32xf32> -> vector<16x32xf32>
    %c0_35 = arith.constant 0 : index
    %c0_36 = arith.constant 0 : index
    %c0_37 = arith.constant 0 : index
    %103 = vector.load %arg8[%c0_35, %c0_36, %c0_37] : memref<1x1x32xf32, #tpu.memory_space<vmem>>, vector<1x1x32xf32>
    %104 = vector.shape_cast %103 : vector<1x1x32xf32> to vector<1x32xf32>
    %105 = vector.broadcast %104 : vector<1x32xf32> to vector<16x32xf32>
    %106 = arith.addf %102, %105 : vector<16x32xf32>
    %107 = vector.broadcast %7 : vector<16x1xf32> to vector<16x32xf32>
    %108 = arith.mulf %106, %107 : vector<16x32xf32>
    %109 = arith.addf %4, %108 : vector<16x32xf32>
    %c0_38 = arith.constant 0 : index
    %c0_39 = arith.constant 0 : index
    %c0_40 = arith.constant 0 : index
    %110 = vector.load %arg9[%c0_38, %c0_39, %c0_40] : memref<1x1x32xf32, #tpu.memory_space<vmem>>, vector<1x1x32xf32>
    %111 = vector.shape_cast %110 : vector<1x1x32xf32> to vector<1x32xf32>
    %c0_41 = arith.constant 0 : index
    %c0_42 = arith.constant 0 : index
    %c0_43 = arith.constant 0 : index
    %112 = vector.load %arg10[%c0_41, %c0_42, %c0_43] : memref<1x1x32xf32, #tpu.memory_space<vmem>>, vector<1x1x32xf32>
    %113 = vector.shape_cast %112 : vector<1x1x32xf32> to vector<1x32xf32>
    %cst_44 = arith.constant dense<0.000000e+00> : vector<16xf32>
    %114 = vector.multi_reduction <add>, %109, %cst_44 [1] : vector<16x32xf32> to vector<16xf32>
    %115 = vector.shape_cast %114 : vector<16xf32> to vector<16x1xf32>
    %cst_45 = arith.constant 3.200000e+01 : f32
    %116 = vector.broadcast %cst_45 : f32 to vector<16x1xf32>
    %117 = arith.divf %115, %116 : vector<16x1xf32>
    %118 = vector.broadcast %117 : vector<16x1xf32> to vector<16x32xf32>
    %119 = arith.subf %109, %118 : vector<16x32xf32>
    %120 = arith.mulf %119, %119 : vector<16x32xf32>
    %cst_46 = arith.constant dense<0.000000e+00> : vector<16xf32>
    %121 = vector.multi_reduction <add>, %120, %cst_46 [1] : vector<16x32xf32> to vector<16xf32>
    %122 = vector.shape_cast %121 : vector<16xf32> to vector<16x1xf32>
    %cst_47 = arith.constant 3.200000e+01 : f32
    %123 = vector.broadcast %cst_47 : f32 to vector<16x1xf32>
    %124 = arith.divf %122, %123 : vector<16x1xf32>
    %125 = vector.broadcast %117 : vector<16x1xf32> to vector<16x32xf32>
    %126 = arith.subf %109, %125 : vector<16x32xf32>
    %cst_48 = arith.constant 9.99999974E-6 : f32
    %127 = vector.broadcast %cst_48 : f32 to vector<16x1xf32>
    %128 = arith.addf %124, %127 : vector<16x1xf32>
    %129 = math.rsqrt %128 : vector<16x1xf32>
    %130 = vector.broadcast %129 : vector<16x1xf32> to vector<16x32xf32>
    %131 = arith.mulf %126, %130 : vector<16x32xf32>
    %132 = vector.broadcast %111 : vector<1x32xf32> to vector<16x32xf32>
    %133 = arith.mulf %131, %132 : vector<16x32xf32>
    %134 = vector.broadcast %113 : vector<1x32xf32> to vector<16x32xf32>
    %135 = arith.addf %133, %134 : vector<16x32xf32>
    %136 = arith.truncf %135 : vector<16x32xf32> to vector<16x32xbf16>
    %c0_49 = arith.constant 0 : index
    %c0_50 = arith.constant 0 : index
    %c0_51 = arith.constant 0 : index
    %137 = vector.load %arg11[%c0_49, %c0_50, %c0_51] : memref<1x32x64xbf16, #tpu.memory_space<vmem>>, vector<1x32x64xbf16>
    %138 = vector.shape_cast %137 : vector<1x32x64xbf16> to vector<32x64xbf16>
    %cst_52 = arith.constant dense<0.000000e+00> : vector<16x64xf32>
    %139 = tpu.matmul %136, %138, %cst_52 {dimension_numbers = #tpu.dot_dimension_numbers<[1], [0], [0], [1], [0, 0, 1, 1], [], []>} : vector<16x32xbf16>, vector<32x64xbf16>, vector<16x64xf32> -> vector<16x64xf32>
    %c0_53 = arith.constant 0 : index
    %c0_54 = arith.constant 0 : index
    %c0_55 = arith.constant 0 : index
    %140 = vector.load %arg12[%c0_53, %c0_54, %c0_55] : memref<1x1x64xf32, #tpu.memory_space<vmem>>, vector<1x1x64xf32>
    %141 = vector.shape_cast %140 : vector<1x1x64xf32> to vector<1x64xf32>
    %142 = vector.broadcast %141 : vector<1x64xf32> to vector<16x64xf32>
    %143 = arith.addf %139, %142 : vector<16x64xf32>
    %cst_56 = arith.constant 0.000000e+00 : f32
    %144 = vector.broadcast %cst_56 : f32 to vector<16x64xf32>
    %145 = arith.cmpf ogt, %143, %144 : vector<16x64xf32>
    %cst_57 = arith.constant 0.00999999977 : f32
    %146 = vector.broadcast %cst_57 : f32 to vector<16x64xf32>
    %147 = arith.mulf %146, %143 : vector<16x64xf32>
    %148 = arith.select %145, %143, %147 : vector<16x64xi1>, vector<16x64xf32>
    %149 = arith.truncf %148 : vector<16x64xf32> to vector<16x64xbf16>
    %c0_58 = arith.constant 0 : index
    %c0_59 = arith.constant 0 : index
    %c0_60 = arith.constant 0 : index
    %150 = vector.load %arg13[%c0_58, %c0_59, %c0_60] : memref<1x64x32xbf16, #tpu.memory_space<vmem>>, vector<1x64x32xbf16>
    %151 = vector.shape_cast %150 : vector<1x64x32xbf16> to vector<64x32xbf16>
    %cst_61 = arith.constant dense<0.000000e+00> : vector<16x32xf32>
    %152 = tpu.matmul %149, %151, %cst_61 {dimension_numbers = #tpu.dot_dimension_numbers<[1], [0], [0], [1], [0, 0, 1, 1], [], []>} : vector<16x64xbf16>, vector<64x32xbf16>, vector<16x32xf32> -> vector<16x32xf32>
    %c0_62 = arith.constant 0 : index
    %c0_63 = arith.constant 0 : index
    %c0_64 = arith.constant 0 : index
    %153 = vector.load %arg14[%c0_62, %c0_63, %c0_64] : memref<1x1x32xf32, #tpu.memory_space<vmem>>, vector<1x1x32xf32>
    %154 = vector.shape_cast %153 : vector<1x1x32xf32> to vector<1x32xf32>
    %155 = vector.broadcast %154 : vector<1x32xf32> to vector<16x32xf32>
    %156 = arith.addf %152, %155 : vector<16x32xf32>
    %157 = vector.broadcast %7 : vector<16x1xf32> to vector<16x32xf32>
    %158 = arith.mulf %156, %157 : vector<16x32xf32>
    %159 = arith.addf %135, %158 : vector<16x32xf32>
    %c0_65 = arith.constant 0 : index
    %c0_66 = arith.constant 0 : index
    %c0_67 = arith.constant 0 : index
    %160 = vector.load %arg15[%c0_65, %c0_66, %c0_67] : memref<1x1x32xf32, #tpu.memory_space<vmem>>, vector<1x1x32xf32>
    %161 = vector.shape_cast %160 : vector<1x1x32xf32> to vector<1x32xf32>
    %c0_68 = arith.constant 0 : index
    %c0_69 = arith.constant 0 : index
    %c0_70 = arith.constant 0 : index
    %162 = vector.load %arg16[%c0_68, %c0_69, %c0_70] : memref<1x1x32xf32, #tpu.memory_space<vmem>>, vector<1x1x32xf32>
    %163 = vector.shape_cast %162 : vector<1x1x32xf32> to vector<1x32xf32>
    %cst_71 = arith.constant dense<0.000000e+00> : vector<16xf32>
    %164 = vector.multi_reduction <add>, %159, %cst_71 [1] : vector<16x32xf32> to vector<16xf32>
    %165 = vector.shape_cast %164 : vector<16xf32> to vector<16x1xf32>
    %cst_72 = arith.constant 3.200000e+01 : f32
    %166 = vector.broadcast %cst_72 : f32 to vector<16x1xf32>
    %167 = arith.divf %165, %166 : vector<16x1xf32>
    %168 = vector.broadcast %167 : vector<16x1xf32> to vector<16x32xf32>
    %169 = arith.subf %159, %168 : vector<16x32xf32>
    %170 = arith.mulf %169, %169 : vector<16x32xf32>
    %cst_73 = arith.constant dense<0.000000e+00> : vector<16xf32>
    %171 = vector.multi_reduction <add>, %170, %cst_73 [1] : vector<16x32xf32> to vector<16xf32>
    %172 = vector.shape_cast %171 : vector<16xf32> to vector<16x1xf32>
    %cst_74 = arith.constant 3.200000e+01 : f32
    %173 = vector.broadcast %cst_74 : f32 to vector<16x1xf32>
    %174 = arith.divf %172, %173 : vector<16x1xf32>
    %175 = vector.broadcast %167 : vector<16x1xf32> to vector<16x32xf32>
    %176 = arith.subf %159, %175 : vector<16x32xf32>
    %cst_75 = arith.constant 9.99999974E-6 : f32
    %177 = vector.broadcast %cst_75 : f32 to vector<16x1xf32>
    %178 = arith.addf %174, %177 : vector<16x1xf32>
    %179 = math.rsqrt %178 : vector<16x1xf32>
    %180 = vector.broadcast %179 : vector<16x1xf32> to vector<16x32xf32>
    %181 = arith.mulf %176, %180 : vector<16x32xf32>
    %182 = vector.broadcast %161 : vector<1x32xf32> to vector<16x32xf32>
    %183 = arith.mulf %181, %182 : vector<16x32xf32>
    %184 = vector.broadcast %163 : vector<1x32xf32> to vector<16x32xf32>
    %185 = arith.addf %183, %184 : vector<16x32xf32>
    %186 = vector.shape_cast %185 : vector<16x32xf32> to vector<2x8x32xf32>
    %c0_76 = arith.constant 0 : index
    %c0_77 = arith.constant 0 : index
    %c0_78 = arith.constant 0 : index
    %187 = vector.load %arg17[%c0_76, %c0_77, %c0_78] : memref<2x8x32xf32, #tpu.memory_space<vmem>>, vector<2x8x32xf32>
    tpu.vector_store %arg17[%c0_76, %c0_77, %c0_78], %186 {strides = array<i32>} : memref<2x8x32xf32, #tpu.memory_space<vmem>>, vector<2x8x32xf32>,
    return
  }
  func.func @transform_0(%arg0: i32, %arg1: i32) -> (i32, i32, i32) {
    %c0_i32 = arith.constant 0 : i32
    %c0_i32_0 = arith.constant 0 : i32
    %c0_i32_1 = arith.constant 0 : i32
    return %arg0, %c0_i32, %c0_i32_0 : i32, i32, i32
  }
  func.func @transform_1(%arg0: i32, %arg1: i32) -> (i32, i32, i32) {
    %c0_i32 = arith.constant 0 : i32
    %c0_i32_0 = arith.constant 0 : i32
    %c0_i32_1 = arith.constant 0 : i32
    return %arg0, %c0_i32, %c0_i32_0 : i32, i32, i32
  }
  func.func @transform_2(%arg0: i32, %arg1: i32) -> (i32, i32, i32) {
    %c0_i32 = arith.constant 0 : i32
    %c0_i32_0 = arith.constant 0 : i32
    %c0_i32_1 = arith.constant 0 : i32
    return %arg0, %c0_i32, %c0_i32_0 : i32, i32, i32
  }
  func.func @transform_3(%arg0: i32, %arg1: i32) -> (i32, i32, i32) {
    %c0_i32 = arith.constant 0 : i32
    %c0_i32_0 = arith.constant 0 : i32
    %c0_i32_1 = arith.constant 0 : i32
    return %arg1, %c0_i32, %c0_i32_0 : i32, i32, i32
  }
  func.func @transform_4(%arg0: i32, %arg1: i32) -> (i32, i32, i32) {
    %c0_i32 = arith.constant 0 : i32
    %c0_i32_0 = arith.constant 0 : i32
    %c0_i32_1 = arith.constant 0 : i32
    return %arg1, %c0_i32, %c0_i32_0 : i32, i32, i32
  }
  func.func @transform_5(%arg0: i32, %arg1: i32) -> (i32, i32, i32) {
    %c0_i32 = arith.constant 0 : i32
    %c0_i32_0 = arith.constant 0 : i32
    %c0_i32_1 = arith.constant 0 : i32
    return %arg1, %c0_i32, %c0_i32_0 : i32, i32, i32
  }
  func.func @transform_6(%arg0: i32, %arg1: i32) -> (i32, i32, i32) {
    %c0_i32 = arith.constant 0 : i32
    %c0_i32_0 = arith.constant 0 : i32
    %c0_i32_1 = arith.constant 0 : i32
    return %arg1, %c0_i32, %c0_i32_0 : i32, i32, i32
  }
  func.func @transform_7(%arg0: i32, %arg1: i32) -> (i32, i32, i32) {
    %c0_i32 = arith.constant 0 : i32
    %c0_i32_0 = arith.constant 0 : i32
    %c0_i32_1 = arith.constant 0 : i32
    return %arg1, %c0_i32, %c0_i32_0 : i32, i32, i32
  }
  func.func @transform_8(%arg0: i32, %arg1: i32) -> (i32, i32, i32) {
    %c0_i32 = arith.constant 0 : i32
    %c0_i32_0 = arith.constant 0 : i32
    %c0_i32_1 = arith.constant 0 : i32
    return %arg1, %c0_i32, %c0_i32_0 : i32, i32, i32
  }
  func.func @transform_9(%arg0: i32, %arg1: i32) -> (i32, i32, i32) {
    %c0_i32 = arith.constant 0 : i32
    %c0_i32_0 = arith.constant 0 : i32
    %c0_i32_1 = arith.constant 0 : i32
    return %arg1, %c0_i32, %c0_i32_0 : i32, i32, i32
  }
  func.func @transform_10(%arg0: i32, %arg1: i32) -> (i32, i32, i32) {
    %c0_i32 = arith.constant 0 : i32
    %c0_i32_0 = arith.constant 0 : i32
    %c0_i32_1 = arith.constant 0 : i32
    return %arg1, %c0_i32, %c0_i32_0 : i32, i32, i32
  }
  func.func @transform_11(%arg0: i32, %arg1: i32) -> (i32, i32, i32) {
    %c0_i32 = arith.constant 0 : i32
    %c0_i32_0 = arith.constant 0 : i32
    %c0_i32_1 = arith.constant 0 : i32
    return %arg1, %c0_i32, %c0_i32_0 : i32, i32, i32
  }
  func.func @transform_12(%arg0: i32, %arg1: i32) -> (i32, i32, i32) {
    %c0_i32 = arith.constant 0 : i32
    %c0_i32_0 = arith.constant 0 : i32
    %c0_i32_1 = arith.constant 0 : i32
    return %arg1, %c0_i32, %c0_i32_0 : i32, i32, i32
  }
  func.func @transform_13(%arg0: i32, %arg1: i32) -> (i32, i32, i32) {
    %c0_i32 = arith.constant 0 : i32
    %c0_i32_0 = arith.constant 0 : i32
    %c0_i32_1 = arith.constant 0 : i32
    return %arg1, %c0_i32, %c0_i32_0 : i32, i32, i32
  }
  func.func @transform_14(%arg0: i32, %arg1: i32) -> (i32, i32, i32) {
    %c0_i32 = arith.constant 0 : i32
    %c0_i32_0 = arith.constant 0 : i32
    %c0_i32_1 = arith.constant 0 : i32
    return %arg1, %c0_i32, %c0_i32_0 : i32, i32, i32
  }
  func.func @transform_15(%arg0: i32, %arg1: i32) -> (i32, i32, i32) {
    %c0_i32 = arith.constant 0 : i32
    %c0_i32_0 = arith.constant 0 : i32
    %c0_i32_1 = arith.constant 0 : i32
    return %arg0, %c0_i32, %c0_i32_0 : i32, i32, i32
  }
}

</mosaic_0001>

<llo_original>
// kernel: tpu_custom_call.1
$region0: #{tpu_custom_call.1}
  #allocation0 [shape = 'u32[]', space=smem, size = 0x4, offset = 0x4, fixed_abs, tag = 'smem constant byte address 0x4 - core index']
  #allocation1 [shape = 'u32[144,128]{1,0:T(1,128)}', space=vmem, size = 0x12000, scoped, tag = 'internal scratch']
  %s0 = inlined_call_operand.vmem [shape: f32[4,8,32], index: 0, kind: input, shape index: {}]
  %s1 = inlined_call_operand.hbm [shape: f32[4,1,8], index: 1, kind: input, shape index: {}]
  %s2 = inlined_call_operand.vmem [shape: f32[4,8,1], index: 2, kind: input, shape index: {}]
  %s3 = inlined_call_operand.vmem [shape: bf16[2,32,96], index: 3, kind: input, shape index: {}]
  %s4 = inlined_call_operand.vmem [shape: f32[2,1,96], index: 4, kind: input, shape index: {}]
  %s5 = inlined_call_operand.vmem [shape: bf16[2,32,32], index: 5, kind: input, shape index: {}]
  %s6 = inlined_call_operand.hbm [shape: f32[2,1,32], index: 6, kind: input, shape index: {}]
  %s7 = inlined_call_operand.hbm [shape: f32[2,1,32], index: 7, kind: input, shape index: {}]
  %s8 = inlined_call_operand.hbm [shape: f32[2,1,32], index: 8, kind: input, shape index: {}]
  %s9 = inlined_call_operand.vmem [shape: bf16[2,32,64], index: 9, kind: input, shape index: {}]
  %s10 = inlined_call_operand.vmem [shape: f32[2,1,64], index: 10, kind: input, shape index: {}]
  %s11 = inlined_call_operand.vmem [shape: bf16[2,64,32], index: 11, kind: input, shape index: {}]
  %s12 = inlined_call_operand.vmem [shape: f32[2,1,32], index: 12, kind: input, shape index: {}]
  %s13 = inlined_call_operand.vmem [shape: f32[2,1,32], index: 13, kind: input, shape index: {}]
  %s14 = inlined_call_operand.vmem [shape: f32[2,1,32], index: 14, kind: input, shape index: {}]
  %s15 = inlined_call_operand.hbm [shape: f32[4,8,32], index: 15, kind: output, shape index: {}]
  %s16 = sld [smem:[#allocation0]]
  $region113: #{tpu_custom_call.1} parent=0
    _
  %s18 = ssub.s32 1, %s16
  %s19 = scalar_select 0, %s18, %s16
  $region1: #{tpu_custom_call.1} parent=0
    #allocation2 [shape = 'u8[2048]{0}', space=vmem, size = 0x800, scoped, tag = 'input window, operand 1']
    #allocation3 [shape = 's32[2]{0}', space=sflag, size = 0x8, scoped, tag = 'scoped memory for tpu_custom_call.1']
    #allocation4 [shape = 's32[2]{0}', space=sflag, size = 0x8, scoped, tag = 'scoped memory for tpu_custom_call.1']
    #allocation5 [shape = 'u8[1024]{0}', space=vmem, size = 0x400, scoped, tag = 'input window, operand 6']
    #allocation6 [shape = 's32[2]{0}', space=sflag, size = 0x8, scoped, tag = 'scoped memory for tpu_custom_call.1']
    #allocation7 [shape = 'u8[1024]{0}', space=vmem, size = 0x400, scoped, tag = 'input window, operand 7']
    #allocation8 [shape = 'u8[1024]{0}', space=vmem, size = 0x400, scoped, tag = 'input window, operand 8']
    #allocation9 [shape = 's32[2]{0}', space=sflag, size = 0x8, scoped, tag = 'scoped memory for tpu_custom_call.1']
    #allocation10 [shape = 'u8[16384]{0}', space=vmem, size = 0x4000, scoped, tag = 'output window, operand 0']
    %20 = vsyncpa [#allocation3], 0
    %s21 = scalar_lea.sflag [#allocation3], 1
    %22 = vsyncpa %s21, 0
    %23 = vsyncpa [#allocation6], 0
    %s24 = scalar_lea.sflag [#allocation6], 1
    %25 = vsyncpa %s24, 0
    %26 = vsyncpa [#allocation9], 0
    %s27 = scalar_lea.sflag [#allocation9], 1
    %28 = vsyncpa %s27, 0
    %29 = vsyncpa [#allocation4], 0
    %s30 = scalar_lea.sflag [#allocation4], 1
    %31 = vsyncpa %s30, 0
    loop: start=0, step=1, limit=6
    $region2: #{tpu_custom_call.1} parent=1 // loop_pre_header
      _
    $region3: #{tpu_custom_call.1} parent=1 // loop_header
      %s33 = sphi 0, %s37
      %p34 = scmp.ge.s32.totalorder %s33, 6
      %s40 = sphi 0, %s52
      %s41 = sphi 0, %s48
      %s42 = sphi 0, %s40
      %s43 = sphi 0, %s41
      %s44 = sphi 0, %s42
      %s45 = sphi 0, %s43
      %s55 = sphi 0, %s57
      %s58 = sphi 0, %s55
      %s59 = sphi 0, %s58
      %s75 = sphi 0, %s59
      %s81 = sphi 0, %s83
      %s84 = sphi 0, %s81
      %s85 = sphi 0, %s84
      %s101 = sphi 0, %s85
      %s107 = sphi 0, %s109
      %s110 = sphi 0, %s107
      %s111 = sphi 0, %s110
      %s127 = sphi 0, %s111
      %s133 = sphi 0, %s135
      %s136 = sphi 0, %s133
      %s137 = sphi 0, %s136
      %s153 = sphi 0, %s137
      %s159 = sphi 0, %s161
      %s162 = sphi 0, %s159
      %s163 = sphi 0, %s162
      %s179 = sphi 0, %s163
      %s185 = sphi 0, %s187
      %s188 = sphi 0, %s185
      %s189 = sphi 0, %s188
      %s205 = sphi 0, %s189
      %s211 = sphi 0, %s213
      %s214 = sphi 0, %s211
      %s215 = sphi 0, %s214
      %s231 = sphi 0, %s215
      %s237 = sphi 0, %s239
      %s240 = sphi 0, %s237
      %s241 = sphi 0, %s240
      %s257 = sphi 0, %s241
      %s263 = sphi 0, %s265
      %s266 = sphi 0, %s263
      %s267 = sphi 0, %s266
      %s283 = sphi 0, %s267
      %s289 = sphi 0, %s291
      %s292 = sphi 0, %s289
      %s293 = sphi 0, %s292
      %s309 = sphi 0, %s293
      %s315 = sphi 0, %s317
      %s318 = sphi 0, %s315
      %s319 = sphi 0, %s318
      %s335 = sphi 0, %s319
      %s341 = sphi 0, %s343
      %s344 = sphi 0, %s341
      %s345 = sphi 0, %s344
      %s361 = sphi 0, %s345
      %s367 = sphi 0, %s369
      %s370 = sphi 0, %s367
      %s371 = sphi 0, %s370
      %s387 = sphi 0, %s371
      %s393 = sphi 0, %s395
      %s396 = sphi 0, %s393
      %s397 = sphi 0, %s396
      %s413 = sphi 0, %s397
      %s419 = sphi 0, %s421
      %s422 = sphi 0, %s419
      %s423 = sphi 0, %s422
      %s439 = sphi 0, %s423
      %s445 = sphi 0, %s447
      %s448 = sphi 0, %s445
      %s449 = sphi 0, %s448
      %s465 = sphi 0, %s449
    $region4: #{tpu_custom_call.1} parent=1 // loop_header_branch
      %36 = sbr.rel (%p34) target = $region8
    $region5: #{tpu_custom_call.1} parent=1 // loop_body
      %s38 = ssub.s32 %s33, 1
      %s39 = ssub.s32 %s33, 2
      %s46 = sadd.s32 1, %s41
      %p47 = scmp.ge.s32.totalorder %s46, 2
      %s48 = scalar_select %p47, 0, %s46
      %s49 = sadd.s32 1, %s40
      %s50 = scalar_select %p47, %s49, %s40
      %p51 = scmp.ge.s32.totalorder %s50, 2
      %s52 = scalar_select %p51, 0, %s50
      %s53 = ssub.s32 %s40, %s52
      %p54 = scmp.eq.s32.totalorder %s53, 0
      %s56 = sadd.s32 %s55, 1
      %s57 = scalar_select %p54, %s55, %s56
      %p60 = pneg %p54
      %p61 = scmp.eq.s32.totalorder %s33, 3
      %p62 = por %p60, %p61
      %p63 = scmp.ne.s32.totalorder %s55, %s58
      %p64 = scmp.eq.s32.totalorder %s33, 0
      %p65 = por %p63, %p64
      %p66 = scmp.ne.s32.totalorder %s55, %s58
      %p67 = scmp.eq.s32.totalorder %s38, 3
      %p68 = por %p66, %p67
      %p69 = scmp.ne.s32.totalorder %s58, %s59
      %p70 = scmp.eq.s32.totalorder %s38, 0
      %p71 = por %p69, %p70
      %p72 = scmp.ne.s32.totalorder %s58, %s59
      %p73 = scmp.eq.s32.totalorder %s39, 3
      %p74 = por %p72, %p73
      %p76 = scmp.ne.s32.totalorder %s59, %s75
      %p77 = scmp.eq.s32.totalorder %s39, 0
      %p78 = por %p76, %p77
      %s79 = ssub.s32 %s40, %s52
      %p80 = scmp.eq.s32.totalorder %s79, 0
      %s82 = sadd.s32 %s81, 1
      %s83 = scalar_select %p80, %s81, %s82
      %p86 = pneg %p80
      %p87 = scmp.eq.s32.totalorder %s33, 3
      %p88 = por %p86, %p87
      %p89 = scmp.ne.s32.totalorder %s81, %s84
      %p90 = scmp.eq.s32.totalorder %s33, 0
      %p91 = por %p89, %p90
      %p92 = scmp.ne.s32.totalorder %s81, %s84
      %p93 = scmp.eq.s32.totalorder %s38, 3
      %p94 = por %p92, %p93
      %p95 = scmp.ne.s32.totalorder %s84, %s85
      %p96 = scmp.eq.s32.totalorder %s38, 0
      %p97 = por %p95, %p96
      %p98 = scmp.ne.s32.totalorder %s84, %s85
      %p99 = scmp.eq.s32.totalorder %s39, 3
      %p100 = por %p98, %p99
      %p102 = scmp.ne.s32.totalorder %s85, %s101
      %p103 = scmp.eq.s32.totalorder %s39, 0
      %p104 = por %p102, %p103
      %s105 = ssub.s32 %s40, %s52
      %p106 = scmp.eq.s32.totalorder %s105, 0
      %s108 = sadd.s32 %s107, 1
      %s109 = scalar_select %p106, %s107, %s108
      %p112 = pneg %p106
      %p113 = scmp.eq.s32.totalorder %s33, 3
      %p114 = por %p112, %p113
      %p115 = scmp.ne.s32.totalorder %s107, %s110
      %p116 = scmp.eq.s32.totalorder %s33, 0
      %p117 = por %p115, %p116
      %p118 = scmp.ne.s32.totalorder %s107, %s110
      %p119 = scmp.eq.s32.totalorder %s38, 3
      %p120 = por %p118, %p119
      %p121 = scmp.ne.s32.totalorder %s110, %s111
      %p122 = scmp.eq.s32.totalorder %s38, 0
      %p123 = por %p121, %p122
      %p124 = scmp.ne.s32.totalorder %s110, %s111
      %p125 = scmp.eq.s32.totalorder %s39, 3
      %p126 = por %p124, %p125
      %p128 = scmp.ne.s32.totalorder %s111, %s127
      %p129 = scmp.eq.s32.totalorder %s39, 0
      %p130 = por %p128, %p129
      %s131 = ssub.s32 %s41, %s48
      %p132 = scmp.eq.s32.totalorder %s131, 0
      %s134 = sadd.s32 %s133, 1
      %s135 = scalar_select %p132, %s133, %s134
      %p138 = pneg %p132
      %p139 = scmp.eq.s32.totalorder %s33, 3
      %p140 = por %p138, %p139
      %p141 = scmp.ne.s32.totalorder %s133, %s136
      %p142 = scmp.eq.s32.totalorder %s33, 0
      %p143 = por %p141, %p142
      %p144 = scmp.ne.s32.totalorder %s133, %s136
      %p145 = scmp.eq.s32.totalorder %s38, 3
      %p146 = por %p144, %p145
      %p147 = scmp.ne.s32.totalorder %s136, %s137
      %p148 = scmp.eq.s32.totalorder %s38, 0
      %p149 = por %p147, %p148
      %p150 = scmp.ne.s32.totalorder %s136, %s137
      %p151 = scmp.eq.s32.totalorder %s39, 3
      %p152 = por %p150, %p151
      %p154 = scmp.ne.s32.totalorder %s137, %s153
      %p155 = scmp.eq.s32.totalorder %s39, 0
      %p156 = por %p154, %p155
      %s157 = ssub.s32 %s41, %s48
      %p158 = scmp.eq.s32.totalorder %s157, 0
      %s160 = sadd.s32 %s159, 1
      %s161 = scalar_select %p158, %s159, %s160
      %p164 = pneg %p158
      %p165 = scmp.eq.s32.totalorder %s33, 3
      %p166 = por %p164, %p165
      %p167 = scmp.ne.s32.totalorder %s159, %s162
      %p168 = scmp.eq.s32.totalorder %s33, 0
      %p169 = por %p167, %p168
      %p170 = scmp.ne.s32.totalorder %s159, %s162
      %p171 = scmp.eq.s32.totalorder %s38, 3
      %p172 = por %p170, %p171
      %p173 = scmp.ne.s32.totalorder %s162, %s163
      %p174 = scmp.eq.s32.totalorder %s38, 0
      %p175 = por %p173, %p174
      %p176 = scmp.ne.s32.totalorder %s162, %s163
      %p177 = scmp.eq.s32.totalorder %s39, 3
      %p178 = por %p176, %p177
      %p180 = scmp.ne.s32.totalorder %s163, %s179
      %p181 = scmp.eq.s32.totalorder %s39, 0
      %p182 = por %p180, %p181
      %s183 = ssub.s32 %s41, %s48
      %p184 = scmp.eq.s32.totalorder %s183, 0
      %s186 = sadd.s32 %s185, 1
      %s187 = scalar_select %p184, %s185, %s186
      %p190 = pneg %p184
      %p191 = scmp.eq.s32.totalorder %s33, 3
      %p192 = por %p190, %p191
      %p193 = scmp.ne.s32.totalorder %s185, %s188
      %p194 = scmp.eq.s32.totalorder %s33, 0
      %p195 = por %p193, %p194
      %p196 = scmp.ne.s32.totalorder %s185, %s188
      %p197 = scmp.eq.s32.totalorder %s38, 3
      %p198 = por %p196, %p197
      %p199 = scmp.ne.s32.totalorder %s188, %s189
      %p200 = scmp.eq.s32.totalorder %s38, 0
      %p201 = por %p199, %p200
      %p202 = scmp.ne.s32.totalorder %s188, %s189
      %p203 = scmp.eq.s32.totalorder %s39, 3
      %p204 = por %p202, %p203
      %p206 = scmp.ne.s32.totalorder %s189, %s205
      %p207 = scmp.eq.s32.totalorder %s39, 0
      %p208 = por %p206, %p207
      %s209 = ssub.s32 %s41, %s48
      %p210 = scmp.eq.s32.totalorder %s209, 0
      %s212 = sadd.s32 %s211, 1
      %s213 = scalar_select %p210, %s211, %s212
      %p216 = pneg %p210
      %p217 = scmp.eq.s32.totalorder %s33, 3
      %p218 = por %p216, %p217
      %p219 = scmp.ne.s32.totalorder %s211, %s214
      %p220 = scmp.eq.s32.totalorder %s33, 0
      %p221 = por %p219, %p220
      %p222 = scmp.ne.s32.totalorder %s211, %s214
      %p223 = scmp.eq.s32.totalorder %s38, 3
      %p224 = por %p222, %p223
      %p225 = scmp.ne.s32.totalorder %s214, %s215
      %p226 = scmp.eq.s32.totalorder %s38, 0
      %p227 = por %p225, %p226
      %p228 = scmp.ne.s32.totalorder %s214, %s215
      %p229 = scmp.eq.s32.totalorder %s39, 3
      %p230 = por %p228, %p229
      %p232 = scmp.ne.s32.totalorder %s215, %s231
      %p233 = scmp.eq.s32.totalorder %s39, 0
      %p234 = por %p232, %p233
      %s235 = ssub.s32 %s41, %s48
      %p236 = scmp.eq.s32.totalorder %s235, 0
      %s238 = sadd.s32 %s237, 1
      %s239 = scalar_select %p236, %s237, %s238
      %p242 = pneg %p236
      %p243 = scmp.eq.s32.totalorder %s33, 3
      %p244 = por %p242, %p243
      %p245 = scmp.ne.s32.totalorder %s237, %s240
      %p246 = scmp.eq.s32.totalorder %s33, 0
      %p247 = por %p245, %p246
      %p248 = scmp.ne.s32.totalorder %s237, %s240
      %p249 = scmp.eq.s32.totalorder %s38, 3
      %p250 = por %p248, %p249
      %p251 = scmp.ne.s32.totalorder %s240, %s241
      %p252 = scmp.eq.s32.totalorder %s38, 0
      %p253 = por %p251, %p252
      %p254 = scmp.ne.s32.totalorder %s240, %s241
      %p255 = scmp.eq.s32.totalorder %s39, 3
      %p256 = por %p254, %p255
      %p258 = scmp.ne.s32.totalorder %s241, %s257
      %p259 = scmp.eq.s32.totalorder %s39, 0
      %p260 = por %p258, %p259
      %s261 = ssub.s32 %s41, %s48
      %p262 = scmp.eq.s32.totalorder %s261, 0
      %s264 = sadd.s32 %s263, 1
      %s265 = scalar_select %p262, %s263, %s264
      %p268 = pneg %p262
      %p269 = scmp.eq.s32.totalorder %s33, 3
      %p270 = por %p268, %p269
      %p271 = scmp.ne.s32.totalorder %s263, %s266
      %p272 = scmp.eq.s32.totalorder %s33, 0
      %p273 = por %p271, %p272
      %p274 = scmp.ne.s32.totalorder %s263, %s266
      %p275 = scmp.eq.s32.totalorder %s38, 3
      %p276 = por %p274, %p275
      %p277 = scmp.ne.s32.totalorder %s266, %s267
      %p278 = scmp.eq.s32.totalorder %s38, 0
      %p279 = por %p277, %p278
      %p280 = scmp.ne.s32.totalorder %s266, %s267
      %p281 = scmp.eq.s32.totalorder %s39, 3
      %p282 = por %p280, %p281
      %p284 = scmp.ne.s32.totalorder %s267, %s283
      %p285 = scmp.eq.s32.totalorder %s39, 0
      %p286 = por %p284, %p285
      %s287 = ssub.s32 %s41, %s48
      %p288 = scmp.eq.s32.totalorder %s287, 0
      %s290 = sadd.s32 %s289, 1
      %s291 = scalar_select %p288, %s289, %s290
      %p294 = pneg %p288
      %p295 = scmp.eq.s32.totalorder %s33, 3
      %p296 = por %p294, %p295
      %p297 = scmp.ne.s32.totalorder %s289, %s292
      %p298 = scmp.eq.s32.totalorder %s33, 0
      %p299 = por %p297, %p298
      %p300 = scmp.ne.s32.totalorder %s289, %s292
      %p301 = scmp.eq.s32.totalorder %s38, 3
      %p302 = por %p300, %p301
      %p303 = scmp.ne.s32.totalorder %s292, %s293
      %p304 = scmp.eq.s32.totalorder %s38, 0
      %p305 = por %p303, %p304
      %p306 = scmp.ne.s32.totalorder %s292, %s293
      %p307 = scmp.eq.s32.totalorder %s39, 3
      %p308 = por %p306, %p307
      %p310 = scmp.ne.s32.totalorder %s293, %s309
      %p311 = scmp.eq.s32.totalorder %s39, 0
      %p312 = por %p310, %p311
      %s313 = ssub.s32 %s41, %s48
      %p314 = scmp.eq.s32.totalorder %s313, 0
      %s316 = sadd.s32 %s315, 1
      %s317 = scalar_select %p314, %s315, %s316
      %p320 = pneg %p314
      %p321 = scmp.eq.s32.totalorder %s33, 3
      %p322 = por %p320, %p321
      %p323 = scmp.ne.s32.totalorder %s315, %s318
      %p324 = scmp.eq.s32.totalorder %s33, 0
      %p325 = por %p323, %p324
      %p326 = scmp.ne.s32.totalorder %s315, %s318
      %p327 = scmp.eq.s32.totalorder %s38, 3
      %p328 = por %p326, %p327
      %p329 = scmp.ne.s32.totalorder %s318, %s319
      %p330 = scmp.eq.s32.totalorder %s38, 0
      %p331 = por %p329, %p330
      %p332 = scmp.ne.s32.totalorder %s318, %s319
      %p333 = scmp.eq.s32.totalorder %s39, 3
      %p334 = por %p332, %p333
      %p336 = scmp.ne.s32.totalorder %s319, %s335
      %p337 = scmp.eq.s32.totalorder %s39, 0
      %p338 = por %p336, %p337
      %s339 = ssub.s32 %s41, %s48
      %p340 = scmp.eq.s32.totalorder %s339, 0
      %s342 = sadd.s32 %s341, 1
      %s343 = scalar_select %p340, %s341, %s342
      %p346 = pneg %p340
      %p347 = scmp.eq.s32.totalorder %s33, 3
      %p348 = por %p346, %p347
      %p349 = scmp.ne.s32.totalorder %s341, %s344
      %p350 = scmp.eq.s32.totalorder %s33, 0
      %p351 = por %p349, %p350
      %p352 = scmp.ne.s32.totalorder %s341, %s344
      %p353 = scmp.eq.s32.totalorder %s38, 3
      %p354 = por %p352, %p353
      %p355 = scmp.ne.s32.totalorder %s344, %s345
      %p356 = scmp.eq.s32.totalorder %s38, 0
      %p357 = por %p355, %p356
      %p358 = scmp.ne.s32.totalorder %s344, %s345
      %p359 = scmp.eq.s32.totalorder %s39, 3
      %p360 = por %p358, %p359
      %p362 = scmp.ne.s32.totalorder %s345, %s361
      %p363 = scmp.eq.s32.totalorder %s39, 0
      %p364 = por %p362, %p363
      %s365 = ssub.s32 %s41, %s48
      %p366 = scmp.eq.s32.totalorder %s365, 0
      %s368 = sadd.s32 %s367, 1
      %s369 = scalar_select %p366, %s367, %s368
      %p372 = pneg %p366
      %p373 = scmp.eq.s32.totalorder %s33, 3
      %p374 = por %p372, %p373
      %p375 = scmp.ne.s32.totalorder %s367, %s370
      %p376 = scmp.eq.s32.totalorder %s33, 0
      %p377 = por %p375, %p376
      %p378 = scmp.ne.s32.totalorder %s367, %s370
      %p379 = scmp.eq.s32.totalorder %s38, 3
      %p380 = por %p378, %p379
      %p381 = scmp.ne.s32.totalorder %s370, %s371
      %p382 = scmp.eq.s32.totalorder %s38, 0
      %p383 = por %p381, %p382
      %p384 = scmp.ne.s32.totalorder %s370, %s371
      %p385 = scmp.eq.s32.totalorder %s39, 3
      %p386 = por %p384, %p385
      %p388 = scmp.ne.s32.totalorder %s371, %s387
      %p389 = scmp.eq.s32.totalorder %s39, 0
      %p390 = por %p388, %p389
      %s391 = ssub.s32 %s41, %s48
      %p392 = scmp.eq.s32.totalorder %s391, 0
      %s394 = sadd.s32 %s393, 1
      %s395 = scalar_select %p392, %s393, %s394
      %p398 = pneg %p392
      %p399 = scmp.eq.s32.totalorder %s33, 3
      %p400 = por %p398, %p399
      %p401 = scmp.ne.s32.totalorder %s393, %s396
      %p402 = scmp.eq.s32.totalorder %s33, 0
      %p403 = por %p401, %p402
      %p404 = scmp.ne.s32.totalorder %s393, %s396
      %p405 = scmp.eq.s32.totalorder %s38, 3
      %p406 = por %p404, %p405
      %p407 = scmp.ne.s32.totalorder %s396, %s397
      %p408 = scmp.eq.s32.totalorder %s38, 0
      %p409 = por %p407, %p408
      %p410 = scmp.ne.s32.totalorder %s396, %s397
      %p411 = scmp.eq.s32.totalorder %s39, 3
      %p412 = por %p410, %p411
      %p414 = scmp.ne.s32.totalorder %s397, %s413
      %p415 = scmp.eq.s32.totalorder %s39, 0
      %p416 = por %p414, %p415
      %s417 = ssub.s32 %s41, %s48
      %p418 = scmp.eq.s32.totalorder %s417, 0
      %s420 = sadd.s32 %s419, 1
      %s421 = scalar_select %p418, %s419, %s420
      %p424 = pneg %p418
      %p425 = scmp.eq.s32.totalorder %s33, 3
      %p426 = por %p424, %p425
      %p427 = scmp.ne.s32.totalorder %s419, %s422
      %p428 = scmp.eq.s32.totalorder %s33, 0
      %p429 = por %p427, %p428
      %p430 = scmp.ne.s32.totalorder %s419, %s422
      %p431 = scmp.eq.s32.totalorder %s38, 3
      %p432 = por %p430, %p431
      %p433 = scmp.ne.s32.totalorder %s422, %s423
      %p434 = scmp.eq.s32.totalorder %s38, 0
      %p435 = por %p433, %p434
      %p436 = scmp.ne.s32.totalorder %s422, %s423
      %p437 = scmp.eq.s32.totalorder %s39, 3
      %p438 = por %p436, %p437
      %p440 = scmp.ne.s32.totalorder %s423, %s439
      %p441 = scmp.eq.s32.totalorder %s39, 0
      %p442 = por %p440, %p441
      %s443 = ssub.s32 %s40, %s52
      %p444 = scmp.eq.s32.totalorder %s443, 0
      %s446 = sadd.s32 %s445, 1
      %s447 = scalar_select %p444, %s445, %s446
      %p450 = pneg %p444
      %p451 = scmp.eq.s32.totalorder %s33, 3
      %p452 = por %p450, %p451
      %p453 = scmp.ne.s32.totalorder %s445, %s448
      %p454 = scmp.eq.s32.totalorder %s33, 0
      %p455 = por %p453, %p454
      %p456 = scmp.ne.s32.totalorder %s445, %s448
      %p457 = scmp.eq.s32.totalorder %s38, 3
      %p458 = por %p456, %p457
      %p459 = scmp.ne.s32.totalorder %s448, %s449
      %p460 = scmp.eq.s32.totalorder %s38, 0
      %p461 = por %p459, %p460
      %p462 = scmp.ne.s32.totalorder %s448, %s449
      %p463 = scmp.eq.s32.totalorder %s39, 3
      %p464 = por %p462, %p463
      %p466 = scmp.ne.s32.totalorder %s449, %s465
      %p467 = scmp.eq.s32.totalorder %s39, 0
      %p468 = por %p466, %p467
      %p469 = scmp.le.s32.totalorder 1, %s33
      %p470 = scmp.lt.s32.totalorder %s33, 5
      %p471 = pnand %p469, %p470
      %p472 = pneg %p471
      // Predicated region
      $region9: #{tpu_custom_call.1} parent=5 // pred_check
        _
      $region10: #{tpu_custom_call.1} parent=5 // pred_check_branch
        %474 = sbr.rel (%p471) target = $region12
      $region11: #{tpu_custom_call.1} parent=5 // pred_region
        %s475 = ssub.s32 %s33, 1
      $region12: #{tpu_custom_call.1} parent=5 // pred_fallthru
        _
      %p476 = scmp.lt.s32.totalorder %s33, 4
      // Predicated region
      $region13: #{tpu_custom_call.1} parent=5 // pred_check
        %p477 = pneg %p476
      $region14: #{tpu_custom_call.1} parent=5 // pred_check_branch
        %479 = sbr.rel (%p477) target = $region16
      $region15: #{tpu_custom_call.1} parent=5 // pred_region
        // Predicated region
        $region17: #{tpu_custom_call.1} parent=15 // pred_check
          %p480 = pneg %p65
        $region18: #{tpu_custom_call.1} parent=15 // pred_check_branch
          %482 = sbr.rel (%p480) target = $region20
        $region19: #{tpu_custom_call.1} parent=15 // pred_region
          %s483 = smul.u32 2, %s40
          %p484 = scmp.lt.s32.totalorder %s483, 3
          %s485 = scalar_select %p484, %s483, 3
          %s486 = smul.addr %s485, 8
          %s487 = scalar_lea.vmem %s0, %s486
          %s488 = smul.u32 2, %s40
        $region20: #{tpu_custom_call.1} parent=15 // pred_fallthru
          _
        // Predicated region
        $region21: #{tpu_custom_call.1} parent=15 // pred_check
          %p489 = pneg %p91
        $region22: #{tpu_custom_call.1} parent=15 // pred_check_branch
          %491 = sbr.rel (%p489) target = $region24
        $region23: #{tpu_custom_call.1} parent=15 // pred_region
          %s492 = sand.u32 %s81, 1
          %s493 = scalar_lea.sflag [#allocation3], %s492
          %s494 = sand.u32 %s81, 1
          %s495 = smul.addr %s494, 2
          %s496 = scalar_lea.vmem [#allocation2], %s495
          %s497 = smul.u32 2, %s40
          %s499 = ssub.s32 32, 32
          %500 = vsyncadd %s493, %s499
          %s501 = smul.addr %s497, 16
          %s502 = scalar_lea.hbm %s1, %s501
          %s503 = sshll.u32 %s496, 4
          %s504 = int_to_ptr.vmem [resolvable:$true] %s503
          %509 = dma.hbm_to_vmem [thread:$0]  %s502, 32, %s504, %s493, 16, 16, 1
        $region24: #{tpu_custom_call.1} parent=15 // pred_fallthru
          _
        // Predicated region
        $region25: #{tpu_custom_call.1} parent=15 // pred_check
          %p510 = pneg %p117
        $region26: #{tpu_custom_call.1} parent=15 // pred_check_branch
          %512 = sbr.rel (%p510) target = $region28
        $region27: #{tpu_custom_call.1} parent=15 // pred_region
          %s513 = smul.u32 2, %s40
          %p514 = scmp.lt.s32.totalorder %s513, 3
          %s515 = scalar_select %p514, %s513, 3
          %s516 = smul.addr %s515, 8
          %s517 = scalar_lea.vmem %s2, %s516
          %s518 = smul.u32 2, %s40
        $region28: #{tpu_custom_call.1} parent=15 // pred_fallthru
          _
        // Predicated region
        $region29: #{tpu_custom_call.1} parent=15 // pred_check
          %p519 = pneg %p143
        $region30: #{tpu_custom_call.1} parent=15 // pred_check_branch
          %521 = sbr.rel (%p519) target = $region32
        $region31: #{tpu_custom_call.1} parent=15 // pred_region
          %p522 = scmp.lt.s32.totalorder %s41, 1
          %s523 = scalar_select %p522, %s41, 1
          %s524 = smul.addr %s523, 4
          %s525 = smul.addr %s524, 4
          %s526 = scalar_lea.vmem %s3, %s525
        $region32: #{tpu_custom_call.1} parent=15 // pred_fallthru
          _
        // Predicated region
        $region33: #{tpu_custom_call.1} parent=15 // pred_check
          %p527 = pneg %p169
        $region34: #{tpu_custom_call.1} parent=15 // pred_check_branch
          %529 = sbr.rel (%p527) target = $region36
        $region35: #{tpu_custom_call.1} parent=15 // pred_region
          %p530 = scmp.lt.s32.totalorder %s41, 1
          %s531 = scalar_select %p530, %s41, 1
          %s532 = scalar_lea.vmem %s4, %s531
        $region36: #{tpu_custom_call.1} parent=15 // pred_fallthru
          _
        // Predicated region
        $region37: #{tpu_custom_call.1} parent=15 // pred_check
          %p533 = pneg %p195
        $region38: #{tpu_custom_call.1} parent=15 // pred_check_branch
          %535 = sbr.rel (%p533) target = $region40
        $region39: #{tpu_custom_call.1} parent=15 // pred_region
          %p536 = scmp.lt.s32.totalorder %s41, 1
          %s537 = scalar_select %p536, %s41, 1
          %s538 = smul.addr %s537, 4
          %s539 = smul.addr %s538, 4
          %s540 = scalar_lea.vmem %s5, %s539
        $region40: #{tpu_custom_call.1} parent=15 // pred_fallthru
          _
        // Predicated region
        $region41: #{tpu_custom_call.1} parent=15 // pred_check
          %p541 = pneg %p221
        $region42: #{tpu_custom_call.1} parent=15 // pred_check_branch
          %543 = sbr.rel (%p541) target = $region44
        $region43: #{tpu_custom_call.1} parent=15 // pred_region
          %s544 = sand.u32 %s33, 1
          %s545 = scalar_lea.sflag [#allocation6], %s544
          %s546 = sand.u32 %s211, 1
          %s547 = scalar_lea.vmem [#allocation5], %s546
          %s549 = ssub.s32 16, 16
          %550 = vsyncadd %s545, %s549
          %s551 = smul.addr %s41, 16
          %s552 = scalar_lea.hbm %s6, %s551
          %s554 = sshll.u32 %s547, 4
          %s555 = int_to_ptr.vmem [resolvable:$true] %s554
          %557 = dma.hbm_to_vmem [thread:$0]  %s552, 16, %s555, %s545
        $region44: #{tpu_custom_call.1} parent=15 // pred_fallthru
          _
        // Predicated region
        $region45: #{tpu_custom_call.1} parent=15 // pred_check
          %p558 = pneg %p247
        $region46: #{tpu_custom_call.1} parent=15 // pred_check_branch
          %560 = sbr.rel (%p558) target = $region48
        $region47: #{tpu_custom_call.1} parent=15 // pred_region
          %s561 = sand.u32 %s33, 1
          %s562 = scalar_lea.sflag [#allocation6], %s561
          %s563 = sand.u32 %s237, 1
          %s564 = scalar_lea.vmem [#allocation7], %s563
          %s566 = ssub.s32 16, 16
          %567 = vsyncadd %s562, %s566
          %s568 = smul.addr %s41, 16
          %s569 = scalar_lea.hbm %s7, %s568
          %s571 = sshll.u32 %s564, 4
          %s572 = int_to_ptr.vmem [resolvable:$true] %s571
          %574 = dma.hbm_to_vmem [thread:$0]  %s569, 16, %s572, %s562
        $region48: #{tpu_custom_call.1} parent=15 // pred_fallthru
          _
        // Predicated region
        $region49: #{tpu_custom_call.1} parent=15 // pred_check
          %p575 = pneg %p273
        $region50: #{tpu_custom_call.1} parent=15 // pred_check_branch
          %577 = sbr.rel (%p575) target = $region52
        $region51: #{tpu_custom_call.1} parent=15 // pred_region
          %s578 = sand.u32 %s263, 1
          %s579 = scalar_lea.sflag [#allocation9], %s578
          %s580 = sand.u32 %s263, 1
          %s581 = scalar_lea.vmem [#allocation8], %s580
          %s583 = ssub.s32 16, 16
          %584 = vsyncadd %s579, %s583
          %s585 = smul.addr %s41, 16
          %s586 = scalar_lea.hbm %s8, %s585
          %s588 = sshll.u32 %s581, 4
          %s589 = int_to_ptr.vmem [resolvable:$true] %s588
          %591 = dma.hbm_to_vmem [thread:$0]  %s586, 16, %s589, %s579
        $region52: #{tpu_custom_call.1} parent=15 // pred_fallthru
          _
        // Predicated region
        $region53: #{tpu_custom_call.1} parent=15 // pred_check
          %p592 = pneg %p299
        $region54: #{tpu_custom_call.1} parent=15 // pred_check_branch
          %594 = sbr.rel (%p592) target = $region56
        $region55: #{tpu_custom_call.1} parent=15 // pred_region
          %p595 = scmp.lt.s32.totalorder %s41, 1
          %s596 = scalar_select %p595, %s41, 1
          %s597 = smul.addr %s596, 4
          %s598 = smul.addr %s597, 4
          %s599 = scalar_lea.vmem %s9, %s598
        $region56: #{tpu_custom_call.1} parent=15 // pred_fallthru
          _
        // Predicated region
        $region57: #{tpu_custom_call.1} parent=15 // pred_check
          %p600 = pneg %p325
        $region58: #{tpu_custom_call.1} parent=15 // pred_check_branch
          %602 = sbr.rel (%p600) target = $region60
        $region59: #{tpu_custom_call.1} parent=15 // pred_region
          %p603 = scmp.lt.s32.totalorder %s41, 1
          %s604 = scalar_select %p603, %s41, 1
          %s605 = scalar_lea.vmem %s10, %s604
        $region60: #{tpu_custom_call.1} parent=15 // pred_fallthru
          _
        // Predicated region
        $region61: #{tpu_custom_call.1} parent=15 // pred_check
          %p606 = pneg %p351
        $region62: #{tpu_custom_call.1} parent=15 // pred_check_branch
          %608 = sbr.rel (%p606) target = $region64
        $region63: #{tpu_custom_call.1} parent=15 // pred_region
          %p609 = scmp.lt.s32.totalorder %s41, 1
          %s610 = scalar_select %p609, %s41, 1
          %s611 = smul.addr %s610, 8
          %s612 = smul.addr %s611, 4
          %s613 = scalar_lea.vmem %s11, %s612
        $region64: #{tpu_custom_call.1} parent=15 // pred_fallthru
          _
        // Predicated region
        $region65: #{tpu_custom_call.1} parent=15 // pred_check
          %p614 = pneg %p377
        $region66: #{tpu_custom_call.1} parent=15 // pred_check_branch
          %616 = sbr.rel (%p614) target = $region68
        $region67: #{tpu_custom_call.1} parent=15 // pred_region
          %p617 = scmp.lt.s32.totalorder %s41, 1
          %s618 = scalar_select %p617, %s41, 1
          %s619 = scalar_lea.vmem %s12, %s618
        $region68: #{tpu_custom_call.1} parent=15 // pred_fallthru
          _
        // Predicated region
        $region69: #{tpu_custom_call.1} parent=15 // pred_check
          %p620 = pneg %p403
        $region70: #{tpu_custom_call.1} parent=15 // pred_check_branch
          %622 = sbr.rel (%p620) target = $region72
        $region71: #{tpu_custom_call.1} parent=15 // pred_region
          %p623 = scmp.lt.s32.totalorder %s41, 1
          %s624 = scalar_select %p623, %s41, 1
          %s625 = scalar_lea.vmem %s13, %s624
        $region72: #{tpu_custom_call.1} parent=15 // pred_fallthru
          _
        // Predicated region
        $region73: #{tpu_custom_call.1} parent=15 // pred_check
          %p626 = pneg %p429
        $region74: #{tpu_custom_call.1} parent=15 // pred_check_branch
          %628 = sbr.rel (%p626) target = $region76
        $region75: #{tpu_custom_call.1} parent=15 // pred_region
          %p629 = scmp.lt.s32.totalorder %s41, 1
          %s630 = scalar_select %p629, %s41, 1
          %s631 = scalar_lea.vmem %s14, %s630
        $region76: #{tpu_custom_call.1} parent=15 // pred_fallthru
          _
      $region16: #{tpu_custom_call.1} parent=5 // pred_fallthru
        _
      %p632 = scmp.le.s32.totalorder 1, %s33
      %p633 = scmp.lt.s32.totalorder %s33, 5
      %p634 = pnand %p632, %p633
      %p635 = pneg %p634
      // Predicated region
      $region77: #{tpu_custom_call.1} parent=5 // pred_check
        _
      $region78: #{tpu_custom_call.1} parent=5 // pred_check_branch
        %637 = sbr.rel (%p634) target = $region80
      $region79: #{tpu_custom_call.1} parent=5 // pred_region
        %s638 = ssub.s32 %s33, 1
        %s639 = sand.u32 %s84, 1
        %s640 = scalar_lea.sflag [#allocation3], %s639
        %s641 = sand.u32 %s84, 1
        %s642 = smul.addr %s641, 2
        %s643 = scalar_lea.vmem [#allocation2], %s642
        // Predicated region
        $region81: #{tpu_custom_call.1} parent=79 // pred_check
          %p644 = pneg %p97
        $region82: #{tpu_custom_call.1} parent=79 // pred_check_branch
          %646 = sbr.rel (%p644) target = $region84
        $region83: #{tpu_custom_call.1} parent=79 // pred_region
          %647 = dma.done %s640, 32
        $region84: #{tpu_custom_call.1} parent=79 // pred_fallthru
          _
        %s648 = sand.u32 %s38, 1
        %s649 = scalar_lea.sflag [#allocation6], %s648
        %s650 = sand.u32 %s214, 1
        %s651 = scalar_lea.vmem [#allocation5], %s650
        // Predicated region
        $region85: #{tpu_custom_call.1} parent=79 // pred_check
          %p652 = pneg %p227
        $region86: #{tpu_custom_call.1} parent=79 // pred_check_branch
          %654 = sbr.rel (%p652) target = $region88
        $region87: #{tpu_custom_call.1} parent=79 // pred_region
          %655 = dma.done %s649, 16
        $region88: #{tpu_custom_call.1} parent=79 // pred_fallthru
          _
        %s656 = sand.u32 %s38, 1
        %s657 = scalar_lea.sflag [#allocation6], %s656
        %s658 = sand.u32 %s240, 1
        %s659 = scalar_lea.vmem [#allocation7], %s658
        // Predicated region
        $region89: #{tpu_custom_call.1} parent=79 // pred_check
          %p660 = pneg %p253
        $region90: #{tpu_custom_call.1} parent=79 // pred_check_branch
          %662 = sbr.rel (%p660) target = $region92
        $region91: #{tpu_custom_call.1} parent=79 // pred_region
          %663 = dma.done %s657, 16
        $region92: #{tpu_custom_call.1} parent=79 // pred_fallthru
          _
        %s664 = sand.u32 %s266, 1
        %s665 = scalar_lea.sflag [#allocation9], %s664
        %s666 = sand.u32 %s266, 1
        %s667 = scalar_lea.vmem [#allocation8], %s666
        // Predicated region
        $region93: #{tpu_custom_call.1} parent=79 // pred_check
          %p668 = pneg %p279
        $region94: #{tpu_custom_call.1} parent=79 // pred_check_branch
          %670 = sbr.rel (%p668) target = $region96
        $region95: #{tpu_custom_call.1} parent=79 // pred_region
          %671 = dma.done %s665, 16
        $region96: #{tpu_custom_call.1} parent=79 // pred_fallthru
          _
        %s672 = smul.u32 2, %s42
        %p673 = scmp.lt.s32.totalorder %s672, 3
        %s674 = scalar_select %p673, %s672, 3
        %s675 = smul.addr %s674, 8
        %s676 = scalar_lea.vmem %s0, %s675
        %p677 = pneg %p71
        %p678 = pneg %p68
        %s679 = sand.u32 %s84, 1
        %s680 = scalar_lea.sflag [#allocation3], %s679
        %s681 = sand.u32 %s84, 1
        %s682 = smul.addr %s681, 2
        %s683 = scalar_lea.vmem [#allocation2], %s682
        %p684 = pneg %p97
        %p685 = pneg %p94
        %s686 = smul.u32 2, %s42
        %p687 = scmp.lt.s32.totalorder %s686, 3
        %s688 = scalar_select %p687, %s686, 3
        %s689 = smul.addr %s688, 8
        %s690 = scalar_lea.vmem %s2, %s689
        %p691 = pneg %p123
        %p692 = pneg %p120
        %p693 = scmp.lt.s32.totalorder %s43, 1
        %s694 = scalar_select %p693, %s43, 1
        %s695 = smul.addr %s694, 4
        %s696 = smul.addr %s695, 4
        %s697 = scalar_lea.vmem %s3, %s696
        %p698 = pneg %p149
        %p699 = pneg %p146
        %p700 = scmp.lt.s32.totalorder %s43, 1
        %s701 = scalar_select %p700, %s43, 1
        %s702 = scalar_lea.vmem %s4, %s701
        %p703 = pneg %p175
        %p704 = pneg %p172
        %p705 = scmp.lt.s32.totalorder %s43, 1
        %s706 = scalar_select %p705, %s43, 1
        %s707 = smul.addr %s706, 4
        %s708 = smul.addr %s707, 4
        %s709 = scalar_lea.vmem %s5, %s708
        %p710 = pneg %p201
        %p711 = pneg %p198
        %s712 = sand.u32 %s38, 1
        %s713 = scalar_lea.sflag [#allocation6], %s712
        %s714 = sand.u32 %s214, 1
        %s715 = scalar_lea.vmem [#allocation5], %s714
        %p716 = pneg %p227
        %p717 = pneg %p224
        %s718 = sand.u32 %s38, 1
        %s719 = scalar_lea.sflag [#allocation6], %s718
        %s720 = sand.u32 %s240, 1
        %s721 = scalar_lea.vmem [#allocation7], %s720
        %p722 = pneg %p253
        %p723 = pneg %p250
        %s724 = sand.u32 %s266, 1
        %s725 = scalar_lea.sflag [#allocation9], %s724
        %s726 = sand.u32 %s266, 1
        %s727 = scalar_lea.vmem [#allocation8], %s726
        %p728 = pneg %p279
        %p729 = pneg %p276
        %p730 = scmp.lt.s32.totalorder %s43, 1
        %s731 = scalar_select %p730, %s43, 1
        %s732 = smul.addr %s731, 4
        %s733 = smul.addr %s732, 4
        %s734 = scalar_lea.vmem %s9, %s733
        %p735 = pneg %p305
        %p736 = pneg %p302
        %p737 = scmp.lt.s32.totalorder %s43, 1
        %s738 = scalar_select %p737, %s43, 1
        %s739 = scalar_lea.vmem %s10, %s738
        %p740 = pneg %p331
        %p741 = pneg %p328
        %p742 = scmp.lt.s32.totalorder %s43, 1
        %s743 = scalar_select %p742, %s43, 1
        %s744 = smul.addr %s743, 8
        %s745 = smul.addr %s744, 4
        %s746 = scalar_lea.vmem %s11, %s745
        %p747 = pneg %p357
        %p748 = pneg %p354
        %p749 = scmp.lt.s32.totalorder %s43, 1
        %s750 = scalar_select %p749, %s43, 1
        %s751 = scalar_lea.vmem %s12, %s750
        %p752 = pneg %p383
        %p753 = pneg %p380
        %p754 = scmp.lt.s32.totalorder %s43, 1
        %s755 = scalar_select %p754, %s43, 1
        %s756 = scalar_lea.vmem %s13, %s755
        %p757 = pneg %p409
        %p758 = pneg %p406
        %p759 = scmp.lt.s32.totalorder %s43, 1
        %s760 = scalar_select %p759, %s43, 1
        %s761 = scalar_lea.vmem %s14, %s760
        %p762 = pneg %p435
        %p763 = pneg %p432
        %p764 = pneg %p461
        %p765 = pneg %p458
        %s766 = sand.u32 %s448, 1
        %s767 = scalar_lea.sflag [#allocation4], %s766
        %s768 = sand.u32 %s448, 1
        %s769 = smul.addr %s768, 16
        %s770 = scalar_lea.vmem [#allocation10], %s769
        %s771 = smul.u32 2, %s42
        %p772 = scmp.lt.s32.totalorder %s771, 3
        %s773 = scalar_select %p772, %s771, 3
        %s774 = smul.addr %s773, 8
        %s775 = scalar_lea.vmem %s0, %s774
        %s776 = smul.u32 2, %s42
        %s777 = smul.u32 2, %s42
        %s778 = smul.u32 2, %s42
        %p779 = scmp.lt.s32.totalorder %s778, 3
        %s780 = scalar_select %p779, %s778, 3
        %s781 = smul.addr %s780, 8
        %s782 = scalar_lea.vmem %s2, %s781
        %s783 = smul.u32 2, %s42
        %p784 = scmp.lt.s32.totalorder %s43, 1
        %s785 = scalar_select %p784, %s43, 1
        %s786 = smul.addr %s785, 4
        %s787 = smul.addr %s786, 4
        %s788 = scalar_lea.vmem %s3, %s787
        %p789 = scmp.lt.s32.totalorder %s43, 1
        %s790 = scalar_select %p789, %s43, 1
        %s791 = scalar_lea.vmem %s4, %s790
        %p792 = scmp.lt.s32.totalorder %s43, 1
        %s793 = scalar_select %p792, %s43, 1
        %s794 = smul.addr %s793, 4
        %s795 = smul.addr %s794, 4
        %s796 = scalar_lea.vmem %s5, %s795
        %p797 = scmp.lt.s32.totalorder %s43, 1
        %s798 = scalar_select %p797, %s43, 1
        %s799 = smul.addr %s798, 4
        %s800 = smul.addr %s799, 4
        %s801 = scalar_lea.vmem %s9, %s800
        %p802 = scmp.lt.s32.totalorder %s43, 1
        %s803 = scalar_select %p802, %s43, 1
        %s804 = scalar_lea.vmem %s10, %s803
        %p805 = scmp.lt.s32.totalorder %s43, 1
        %s806 = scalar_select %p805, %s43, 1
        %s807 = smul.addr %s806, 8
        %s808 = smul.addr %s807, 4
        %s809 = scalar_lea.vmem %s11, %s808
        %p810 = scmp.lt.s32.totalorder %s43, 1
        %s811 = scalar_select %p810, %s43, 1
        %s812 = scalar_lea.vmem %s12, %s811
        %p813 = scmp.lt.s32.totalorder %s43, 1
        %s814 = scalar_select %p813, %s43, 1
        %s815 = scalar_lea.vmem %s13, %s814
        %p816 = scmp.lt.s32.totalorder %s43, 1
        %s817 = scalar_select %p816, %s43, 1
        %s818 = scalar_lea.vmem %s14, %s817
        %s819 = smul.u32 2, %s42
        %p821 = scmp.eq.s32.totalorder %s43, 0
        // Predicated region
        $region97: #{tpu_custom_call.1} parent=79 // pred_check
          %p822 = pneg %p821
        $region98: #{tpu_custom_call.1} parent=79 // pred_check_branch
          %824 = sbr.rel (%p822) target = $region100
        $region99: #{tpu_custom_call.1} parent=79 // pred_region
          %v825 = vld [vmem:[%s775] sm:$0xff]
          %v826 = vld [vmem:[%s775 + $0x8] sm:$0xff]
          %vm827 = vcmask 261120
          %828 = vst.msk [vmem:[%s770] sm:$0xff] %vm827, %v825
          %829 = vst.msk [vmem:[%s770 + $0x8] sm:$0xff] %vm827, %v826
        $region100: #{tpu_custom_call.1} parent=79 // pred_fallthru
          _
        %v830 = vld [vmem:[%s770] sm:$0xff]
        %v831 = vld [vmem:[%s770 + $0x8] sm:$0xff]
        %v832 = vld [vmem:[%s643] sm:$0x1]
        %v833 = vld [vmem:[%s643 + $0x1] sm:$0x1]
        %v834 = vld [vmem:[%s782] sm:$0xff]
        %v835 = vld [vmem:[%s782 + $0x8] sm:$0xff]
        %v836 = vpack.c.bf16 %v831, %v830
        %v837 = vld [vmem:[%s788] sm:$0xf]
        %v838 = vld [vmem:[%s788 + $0x4] sm:$0xf]
        %v839 = vld [vmem:[%s788 + $0x8] sm:$0xf]
        %v840 = vld [vmem:[%s788 + $0xc] sm:$0xf]
        %v841 = vld [vmem:[%s791] sm:$0x1]
        %v843 = vlaneseq
        %v844 = vshrl.u32 %v843, 7
        %v845 = vsub.s32 0, %v844
        %v846 = vrot.slane %v841, %v845
        %v852 = vunpack.c.l.b16 %v837
        %v853 = vunpack.c.l.b16 %v838
        %v854 = vunpack.c.l.b16 %v839
        %v855 = vunpack.c.l.b16 %v840
        %v856 = vpack.c.b16 %v853, %v852
        %v857 = vpack.c.b16 %v855, %v854
        %vm860 = vcmask 261120
        %v862 = vsel %vm860, %v836, 0
        %864 = vmatprep.subr.bf16.mxu0 0
        %865 = vmatpush1.bf16.msra.mxu0 %v856
        %866 = vmatprep.subr.bf16.mxu0 0
        %867 = vmatpush1.bf16.msra.mxu0 %v857
        %868 = vmatprep.subr.bf16.mxu0 0
        %869 = vmatpush1.bf16.msra.mxu0 0
        %870 = vmatprep.subr.bf16.mxu0 0
        %871 = vmatpush1.bf16.msra.mxu0 0
        %872 = vmatprep.subr.bf16.mxu0 0
        %873 = vmatpush1.bf16.msra.mxu0 0
        %874 = vmatprep.subr.bf16.mxu0 0
        %875 = vmatpush1.bf16.msra.mxu0 0
        %876 = vmatprep.subr.bf16.mxu0 0
        %877 = vmatpush1.bf16.msra.mxu0 0
        %878 = vmatprep.subr.bf16.mxu0 0
        %879 = vmatpush1.bf16.msra.mxu0 0
        %880 = vmatprep.subr.bf16.mxu0 0
        %881 = vmatpush1.bf16.msra.mxu0 0
        %882 = vmatprep.subr.bf16.mxu0 0
        %883 = vmatpush1.bf16.msra.mxu0 0
        %884 = vmatprep.subr.bf16.mxu0 0
        %885 = vmatpush1.bf16.msra.mxu0 0
        %886 = vmatprep.subr.bf16.mxu0 0
        %887 = vmatpush1.bf16.msra.mxu0 0
        %888 = vmatprep.subr.bf16.mxu0 0
        %889 = vmatpush1.bf16.msra.mxu0 0
        %890 = vmatprep.subr.bf16.mxu0 0
        %891 = vmatpush1.bf16.msra.mxu0 0
        %892 = vmatprep.subr.bf16.mxu0 0
        %893 = vmatpush1.bf16.msra.mxu0 0
        %894 = vmatprep.subr.bf16.mxu0 0
        %895 = vmatpush1.bf16.msra.mxu0 0
        %896 = vmatprep.mubr.bf16.mxu0 0
        %897 = vmatmul.mubr.bf16.gmra.mrb[0].mxu0 %v862
        %v898 = vpop.f32.mrb[0].mxu0
        %v899 = vadd.f32 %v846, %v898
        %v900 = vpop.f32.mrb[0].mxu0
        %v901 = vpop.f32.mrb[0].mxu0
        %v902 = vadd.f32 %v846, %v901
        %v903 = vpop.f32.mrb[0].mxu0
        %904 = vdwg.mxu0
        %v905 = vpack.c.bf16 %v899, %v899
        %v906 = vpack.c.bf16 %v902, %v902
        %v909 = vlaneseq
        %v910 = vshrl.u32 %v909, 7
        %v911 = vsub.s32 0, %v910
        %v912 = vrot.slane %v832, %v911
        %v913 = vlaneseq
        %v914 = vshrl.u32 %v913, 7
        %v915 = vsub.s32 0, %v914
        %v916 = vrot.slane %v833, %v915
        %920 = vrot.lane.b32.xlu0 %v905, 96
        %v921 = vpop.permute.xlu0 %920
        %vm922 = vcmask 64512
        %v924 = vsel %vm922, %v905, 0
        %v927 = vsel %vm922, %v921, 0
        %929 = vmatprep.subr.bf16.mxu0 0
        %930 = vmatpush1.bf16.xpose.msra.mxu0 %v927
        %931 = vmatprep.subr.bf16.mxu0 0
        %932 = vmatpush1.bf16.xpose.msra.mxu0 0
        %933 = vmatprep.subr.bf16.mxu0 0
        %934 = vmatpush1.bf16.xpose.msra.mxu0 0
        %935 = vmatprep.subr.bf16.mxu0 0
        %936 = vmatpush1.bf16.xpose.msra.mxu0 0
        %937 = vmatprep.subr.bf16.mxu0 0
        %938 = vmatpush1.bf16.xpose.msra.mxu0 0
        %939 = vmatprep.subr.bf16.mxu0 0
        %940 = vmatpush1.bf16.xpose.msra.mxu0 0
        %941 = vmatprep.subr.bf16.mxu0 0
        %942 = vmatpush1.bf16.xpose.msra.mxu0 0
        %943 = vmatprep.subr.bf16.mxu0 0
        %944 = vmatpush1.bf16.xpose.msra.mxu0 0
        %945 = vmatprep.subr.bf16.mxu0 0
        %946 = vmatpush1.bf16.xpose.msra.mxu0 0
        %947 = vmatprep.subr.bf16.mxu0 0
        %948 = vmatpush1.bf16.xpose.msra.mxu0 0
        %949 = vmatprep.subr.bf16.mxu0 0
        %950 = vmatpush1.bf16.xpose.msra.mxu0 0
        %951 = vmatprep.subr.bf16.mxu0 0
        %952 = vmatpush1.bf16.xpose.msra.mxu0 0
        %953 = vmatprep.subr.bf16.mxu0 0
        %954 = vmatpush1.bf16.xpose.msra.mxu0 0
        %955 = vmatprep.subr.bf16.mxu0 0
        %956 = vmatpush1.bf16.xpose.msra.mxu0 0
        %957 = vmatprep.subr.bf16.mxu0 0
        %958 = vmatpush1.bf16.xpose.msra.mxu0 0
        %959 = vmatprep.subr.bf16.mxu0 0
        %960 = vmatpush1.bf16.xpose.msra.mxu0 0
        %961 = vmatprep.mubr.bf16.mxu0 0
        %962 = vmatmul.mubr.bf16.gmra.mrb[0].mxu0 %v924
        %v963 = vpop.f32.mrb[0].mxu0
        %v964 = vadd.f32 %v912, %v963
        %v965 = vpop.f32.mrb[0].mxu0
        %v966 = vpop.f32.mrb[0].mxu0
        %v967 = vpop.f32.mrb[0].mxu0
        %968 = vdwg.mxu0
        %970 = vrot.lane.b32.xlu0 %v906, 96
        %v971 = vpop.permute.xlu0 %970
        %v973 = vsel %vm922, %v906, 0
        %v976 = vsel %vm922, %v971, 0
        %978 = vmatprep.subr.bf16.mxu0 0
        %979 = vmatpush1.bf16.xpose.msra.mxu0 %v976
        %980 = vmatprep.subr.bf16.mxu0 0
        %981 = vmatpush1.bf16.xpose.msra.mxu0 0
        %982 = vmatprep.subr.bf16.mxu0 0
        %983 = vmatpush1.bf16.xpose.msra.mxu0 0
        %984 = vmatprep.subr.bf16.mxu0 0
        %985 = vmatpush1.bf16.xpose.msra.mxu0 0
        %986 = vmatprep.subr.bf16.mxu0 0
        %987 = vmatpush1.bf16.xpose.msra.mxu0 0
        %988 = vmatprep.subr.bf16.mxu0 0
        %989 = vmatpush1.bf16.xpose.msra.mxu0 0
        %990 = vmatprep.subr.bf16.mxu0 0
        %991 = vmatpush1.bf16.xpose.msra.mxu0 0
        %992 = vmatprep.subr.bf16.mxu0 0
        %993 = vmatpush1.bf16.xpose.msra.mxu0 0
        %994 = vmatprep.subr.bf16.mxu0 0
        %995 = vmatpush1.bf16.xpose.msra.mxu0 0
        %996 = vmatprep.subr.bf16.mxu0 0
        %997 = vmatpush1.bf16.xpose.msra.mxu0 0
        %998 = vmatprep.subr.bf16.mxu0 0
        %999 = vmatpush1.bf16.xpose.msra.mxu0 0
        %1000 = vmatprep.subr.bf16.mxu0 0
        %1001 = vmatpush1.bf16.xpose.msra.mxu0 0
        %1002 = vmatprep.subr.bf16.mxu0 0
        %1003 = vmatpush1.bf16.xpose.msra.mxu0 0
        %1004 = vmatprep.subr.bf16.mxu0 0
        %1005 = vmatpush1.bf16.xpose.msra.mxu0 0
        %1006 = vmatprep.subr.bf16.mxu0 0
        %1007 = vmatpush1.bf16.xpose.msra.mxu0 0
        %1008 = vmatprep.subr.bf16.mxu0 0
        %1009 = vmatpush1.bf16.xpose.msra.mxu0 0
        %1010 = vmatprep.mubr.bf16.mxu0 0
        %1011 = vmatmul.mubr.bf16.gmra.mrb[0].mxu0 %v973
        %v1012 = vpop.f32.mrb[0].mxu0
        %v1013 = vadd.f32 %v916, %v1012
        %v1014 = vpop.f32.mrb[0].mxu0
        %v1015 = vpop.f32.mrb[0].mxu0
        %v1016 = vpop.f32.mrb[0].mxu0
        %1017 = vdwg.mxu0
        %v1018 = vsel %vm922, %v964, -inf
        %1019 = vmax.xlane.f32.xlu0 %v1018
        %v1020 = vpop.xlane.xlu0 %1019
        %v1021 = vsel %vm922, %v1013, -inf
        %1022 = vmax.xlane.f32.xlu0 %v1021
        %v1023 = vpop.xlane.xlu0 %1022
        %v1024 = vsub.f32 %v964, %v1020
        %v1025 = vsub.f32 %v1013, %v1023
        %v1026 = vmul.f32 %v1024, 1.442695
        %v1027 = vpow.pop %v1026
        %v1028 = vmul.f32 %v1025, 1.442695
        %v1029 = vpow.pop %v1028
        %v1030 = vsel %vm922, %v1027, 0.0
        %1031 = vadd.xlane.f32.xlu0 %v1030
        %v1032 = vpop.xlane.xlu0 %1031
        %v1033 = vsel %vm922, %v1029, 0.0
        %1034 = vadd.xlane.f32.xlu0 %v1033
        %v1035 = vpop.xlane.xlu0 %1034
        %v1036 = vrcp.pop %v1032
        %v1037 = vmul.f32 %v1027, %v1036
        %v1038 = vrcp.pop %v1035
        %v1039 = vmul.f32 %v1029, %v1038
        %v1040 = vpack.c.bf16 %v1037, %v1037
        %v1041 = vpack.c.bf16 %v1039, %v1039
        %1042 = vrot.lane.b32.xlu0 %v905, 64
        %v1043 = vpop.permute.xlu0 %1042
        %v1045 = vsel %vm922, %v1040, 0
        %vm1047 = vcmask 1043456
        %v1049 = vsel %vm1047, %v1043, 0
        %1051 = vmatprep.subr.bf16.mxu0 0
        %1052 = vmatpush1.bf16.msra.mxu0 %v1049
        %1053 = vmatprep.subr.bf16.mxu0 0
        %1054 = vmatpush1.bf16.msra.mxu0 0
        %1055 = vmatprep.subr.bf16.mxu0 0
        %1056 = vmatpush1.bf16.msra.mxu0 0
        %1057 = vmatprep.subr.bf16.mxu0 0
        %1058 = vmatpush1.bf16.msra.mxu0 0
        %1059 = vmatprep.subr.bf16.mxu0 0
        %1060 = vmatpush1.bf16.msra.mxu0 0
        %1061 = vmatprep.subr.bf16.mxu0 0
        %1062 = vmatpush1.bf16.msra.mxu0 0
        %1063 = vmatprep.subr.bf16.mxu0 0
        %1064 = vmatpush1.bf16.msra.mxu0 0
        %1065 = vmatprep.subr.bf16.mxu0 0
        %1066 = vmatpush1.bf16.msra.mxu0 0
        %1067 = vmatprep.subr.bf16.mxu0 0
        %1068 = vmatpush1.bf16.msra.mxu0 0
        %1069 = vmatprep.subr.bf16.mxu0 0
        %1070 = vmatpush1.bf16.msra.mxu0 0
        %1071 = vmatprep.subr.bf16.mxu0 0
        %1072 = vmatpush1.bf16.msra.mxu0 0
        %1073 = vmatprep.subr.bf16.mxu0 0
        %1074 = vmatpush1.bf16.msra.mxu0 0
        %1075 = vmatprep.subr.bf16.mxu0 0
        %1076 = vmatpush1.bf16.msra.mxu0 0
        %1077 = vmatprep.subr.bf16.mxu0 0
        %1078 = vmatpush1.bf16.msra.mxu0 0
        %1079 = vmatprep.subr.bf16.mxu0 0
        %1080 = vmatpush1.bf16.msra.mxu0 0
        %1081 = vmatprep.subr.bf16.mxu0 0
        %1082 = vmatpush1.bf16.msra.mxu0 0
        %1083 = vmatprep.mubr.bf16.mxu0 0
        %1084 = vmatmul.mubr.bf16.gmra.mrb[0].mxu0 %v1045
        %v1085 = vpop.f32.mrb[0].mxu0
        %v1086 = vadd.f32 0.0, %v1085
        %v1087 = vpop.f32.mrb[0].mxu0
        %v1088 = vpop.f32.mrb[0].mxu0
        %v1089 = vpop.f32.mrb[0].mxu0
        %1090 = vdwg.mxu0
        %1091 = vrot.lane.b32.xlu0 %v906, 64
        %v1092 = vpop.permute.xlu0 %1091
        %v1094 = vsel %vm922, %v1041, 0
        %v1097 = vsel %vm1047, %v1092, 0
        %1099 = vmatprep.subr.bf16.mxu0 0
        %1100 = vmatpush1.bf16.msra.mxu0 %v1097
        %1101 = vmatprep.subr.bf16.mxu0 0
        %1102 = vmatpush1.bf16.msra.mxu0 0
        %1103 = vmatprep.subr.bf16.mxu0 0
        %1104 = vmatpush1.bf16.msra.mxu0 0
        %1105 = vmatprep.subr.bf16.mxu0 0
        %1106 = vmatpush1.bf16.msra.mxu0 0
        %1107 = vmatprep.subr.bf16.mxu0 0
        %1108 = vmatpush1.bf16.msra.mxu0 0
        %1109 = vmatprep.subr.bf16.mxu0 0
        %1110 = vmatpush1.bf16.msra.mxu0 0
        %1111 = vmatprep.subr.bf16.mxu0 0
        %1112 = vmatpush1.bf16.msra.mxu0 0
        %1113 = vmatprep.subr.bf16.mxu0 0
        %1114 = vmatpush1.bf16.msra.mxu0 0
        %1115 = vmatprep.subr.bf16.mxu0 0
        %1116 = vmatpush1.bf16.msra.mxu0 0
        %1117 = vmatprep.subr.bf16.mxu0 0
        %1118 = vmatpush1.bf16.msra.mxu0 0
        %1119 = vmatprep.subr.bf16.mxu0 0
        %1120 = vmatpush1.bf16.msra.mxu0 0
        %1121 = vmatprep.subr.bf16.mxu0 0
        %1122 = vmatpush1.bf16.msra.mxu0 0
        %1123 = vmatprep.subr.bf16.mxu0 0
        %1124 = vmatpush1.bf16.msra.mxu0 0
        %1125 = vmatprep.subr.bf16.mxu0 0
        %1126 = vmatpush1.bf16.msra.mxu0 0
        %1127 = vmatprep.subr.bf16.mxu0 0
        %1128 = vmatpush1.bf16.msra.mxu0 0
        %1129 = vmatprep.subr.bf16.mxu0 0
        %1130 = vmatpush1.bf16.msra.mxu0 0
        %1131 = vmatprep.mubr.bf16.mxu0 0
        %1132 = vmatmul.mubr.bf16.gmra.mrb[0].mxu0 %v1094
        %v1133 = vpop.f32.mrb[0].mxu0
        %v1134 = vadd.f32 0.0, %v1133
        %v1135 = vpop.f32.mrb[0].mxu0
        %v1136 = vpop.f32.mrb[0].mxu0
        %v1137 = vpop.f32.mrb[0].mxu0
        %1138 = vdwg.mxu0
        %1139 = vrot.lane.b32.xlu0 %v905, 120
        %v1140 = vpop.permute.xlu0 %1139
        %1141 = vrot.lane.b32.xlu0 %v905, 88
        %v1142 = vpop.permute.xlu0 %1141
        %v1144 = vsel %vm922, %v1140, 0
        %v1147 = vsel %vm922, %v1142, 0
        %1149 = vmatprep.subr.bf16.mxu0 0
        %1150 = vmatpush1.bf16.xpose.msra.mxu0 %v1147
        %1151 = vmatprep.subr.bf16.mxu0 0
        %1152 = vmatpush1.bf16.xpose.msra.mxu0 0
        %1153 = vmatprep.subr.bf16.mxu0 0
        %1154 = vmatpush1.bf16.xpose.msra.mxu0 0
        %1155 = vmatprep.subr.bf16.mxu0 0
        %1156 = vmatpush1.bf16.xpose.msra.mxu0 0
        %1157 = vmatprep.subr.bf16.mxu0 0
        %1158 = vmatpush1.bf16.xpose.msra.mxu0 0
        %1159 = vmatprep.subr.bf16.mxu0 0
        %1160 = vmatpush1.bf16.xpose.msra.mxu0 0
        %1161 = vmatprep.subr.bf16.mxu0 0
        %1162 = vmatpush1.bf16.xpose.msra.mxu0 0
        %1163 = vmatprep.subr.bf16.mxu0 0
        %1164 = vmatpush1.bf16.xpose.msra.mxu0 0
        %1165 = vmatprep.subr.bf16.mxu0 0
        %1166 = vmatpush1.bf16.xpose.msra.mxu0 0
        %1167 = vmatprep.subr.bf16.mxu0 0
        %1168 = vmatpush1.bf16.xpose.msra.mxu0 0
        %1169 = vmatprep.subr.bf16.mxu0 0
        %1170 = vmatpush1.bf16.xpose.msra.mxu0 0
        %1171 = vmatprep.subr.bf16.mxu0 0
        %1172 = vmatpush1.bf16.xpose.msra.mxu0 0
        %1173 = vmatprep.subr.bf16.mxu0 0
        %1174 = vmatpush1.bf16.xpose.msra.mxu0 0
        %1175 = vmatprep.subr.bf16.mxu0 0
        %1176 = vmatpush1.bf16.xpose.msra.mxu0 0
        %1177 = vmatprep.subr.bf16.mxu0 0
        %1178 = vmatpush1.bf16.xpose.msra.mxu0 0
        %1179 = vmatprep.subr.bf16.mxu0 0
        %1180 = vmatpush1.bf16.xpose.msra.mxu0 0
        %1181 = vmatprep.mubr.bf16.mxu0 0
        %1182 = vmatmul.mubr.bf16.gmra.mrb[0].mxu0 %v1144
        %v1183 = vpop.f32.mrb[0].mxu0
        %v1184 = vadd.f32 %v912, %v1183
        %v1185 = vpop.f32.mrb[0].mxu0
        %v1186 = vpop.f32.mrb[0].mxu0
        %v1187 = vpop.f32.mrb[0].mxu0
        %1188 = vdwg.mxu0
        %1189 = vrot.lane.b32.xlu0 %v906, 120
        %v1190 = vpop.permute.xlu0 %1189
        %1191 = vrot.lane.b32.xlu0 %v906, 88
        %v1192 = vpop.permute.xlu0 %1191
        %v1194 = vsel %vm922, %v1190, 0
        %v1197 = vsel %vm922, %v1192, 0
        %1199 = vmatprep.subr.bf16.mxu0 0
        %1200 = vmatpush1.bf16.xpose.msra.mxu0 %v1197
        %1201 = vmatprep.subr.bf16.mxu0 0
        %1202 = vmatpush1.bf16.xpose.msra.mxu0 0
        %1203 = vmatprep.subr.bf16.mxu0 0
        %1204 = vmatpush1.bf16.xpose.msra.mxu0 0
        %1205 = vmatprep.subr.bf16.mxu0 0
        %1206 = vmatpush1.bf16.xpose.msra.mxu0 0
        %1207 = vmatprep.subr.bf16.mxu0 0
        %1208 = vmatpush1.bf16.xpose.msra.mxu0 0
        %1209 = vmatprep.subr.bf16.mxu0 0
        %1210 = vmatpush1.bf16.xpose.msra.mxu0 0
        %1211 = vmatprep.subr.bf16.mxu0 0
        %1212 = vmatpush1.bf16.xpose.msra.mxu0 0
        %1213 = vmatprep.subr.bf16.mxu0 0
        %1214 = vmatpush1.bf16.xpose.msra.mxu0 0
        %1215 = vmatprep.subr.bf16.mxu0 0
        %1216 = vmatpush1.bf16.xpose.msra.mxu0 0
        %1217 = vmatprep.subr.bf16.mxu0 0
        %1218 = vmatpush1.bf16.xpose.msra.mxu0 0
        %1219 = vmatprep.subr.bf16.mxu0 0
        %1220 = vmatpush1.bf16.xpose.msra.mxu0 0
        %1221 = vmatprep.subr.bf16.mxu0 0
        %1222 = vmatpush1.bf16.xpose.msra.mxu0 0
        %1223 = vmatprep.subr.bf16.mxu0 0
        %1224 = vmatpush1.bf16.xpose.msra.mxu0 0
        %1225 = vmatprep.subr.bf16.mxu0 0
        %1226 = vmatpush1.bf16.xpose.msra.mxu0 0
        %1227 = vmatprep.subr.bf16.mxu0 0
        %1228 = vmatpush1.bf16.xpose.msra.mxu0 0
        %1229 = vmatprep.subr.bf16.mxu0 0
        %1230 = vmatpush1.bf16.xpose.msra.mxu0 0
        %1231 = vmatprep.mubr.bf16.mxu0 0
        %1232 = vmatmul.mubr.bf16.gmra.mrb[0].mxu0 %v1194
        %v1233 = vpop.f32.mrb[0].mxu0
        %v1234 = vadd.f32 %v916, %v1233
        %v1235 = vpop.f32.mrb[0].mxu0
        %v1236 = vpop.f32.mrb[0].mxu0
        %v1237 = vpop.f32.mrb[0].mxu0
        %1238 = vdwg.mxu0
        %v1239 = vsel %vm922, %v1184, -inf
        %1240 = vmax.xlane.f32.xlu0 %v1239
        %v1241 = vpop.xlane.xlu0 %1240
        %v1242 = vsel %vm922, %v1234, -inf
        %1243 = vmax.xlane.f32.xlu0 %v1242
        %v1244 = vpop.xlane.xlu0 %1243
        %v1245 = vsub.f32 %v1184, %v1241
        %v1246 = vsub.f32 %v1234, %v1244
        %v1247 = vmul.f32 %v1245, 1.442695
        %v1248 = vpow.pop %v1247
        %v1249 = vmul.f32 %v1246, 1.442695
        %v1250 = vpow.pop %v1249
        %v1251 = vsel %vm922, %v1248, 0.0
        %1252 = vadd.xlane.f32.xlu0 %v1251
        %v1253 = vpop.xlane.xlu0 %1252
        %v1254 = vsel %vm922, %v1250, 0.0
        %1255 = vadd.xlane.f32.xlu0 %v1254
        %v1256 = vpop.xlane.xlu0 %1255
        %v1257 = vrcp.pop %v1253
        %v1258 = vmul.f32 %v1248, %v1257
        %v1259 = vrcp.pop %v1256
        %v1260 = vmul.f32 %v1250, %v1259
        %v1261 = vpack.c.bf16 %v1258, %v1258
        %v1262 = vpack.c.bf16 %v1260, %v1260
        %1263 = vrot.lane.b32.xlu0 %v905, 56
        %v1264 = vpop.permute.xlu0 %1263
        %v1266 = vsel %vm922, %v1261, 0
        %v1269 = vsel %vm1047, %v1264, 0
        %1271 = vmatprep.subr.bf16.mxu0 0
        %1272 = vmatpush1.bf16.msra.mxu0 %v1269
        %1273 = vmatprep.subr.bf16.mxu0 0
        %1274 = vmatpush1.bf16.msra.mxu0 0
        %1275 = vmatprep.subr.bf16.mxu0 0
        %1276 = vmatpush1.bf16.msra.mxu0 0
        %1277 = vmatprep.subr.bf16.mxu0 0
        %1278 = vmatpush1.bf16.msra.mxu0 0
        %1279 = vmatprep.subr.bf16.mxu0 0
        %1280 = vmatpush1.bf16.msra.mxu0 0
        %1281 = vmatprep.subr.bf16.mxu0 0
        %1282 = vmatpush1.bf16.msra.mxu0 0
        %1283 = vmatprep.subr.bf16.mxu0 0
        %1284 = vmatpush1.bf16.msra.mxu0 0
        %1285 = vmatprep.subr.bf16.mxu0 0
        %1286 = vmatpush1.bf16.msra.mxu0 0
        %1287 = vmatprep.subr.bf16.mxu0 0
        %1288 = vmatpush1.bf16.msra.mxu0 0
        %1289 = vmatprep.subr.bf16.mxu0 0
        %1290 = vmatpush1.bf16.msra.mxu0 0
        %1291 = vmatprep.subr.bf16.mxu0 0
        %1292 = vmatpush1.bf16.msra.mxu0 0
        %1293 = vmatprep.subr.bf16.mxu0 0
        %1294 = vmatpush1.bf16.msra.mxu0 0
        %1295 = vmatprep.subr.bf16.mxu0 0
        %1296 = vmatpush1.bf16.msra.mxu0 0
        %1297 = vmatprep.subr.bf16.mxu0 0
        %1298 = vmatpush1.bf16.msra.mxu0 0
        %1299 = vmatprep.subr.bf16.mxu0 0
        %1300 = vmatpush1.bf16.msra.mxu0 0
        %1301 = vmatprep.subr.bf16.mxu0 0
        %1302 = vmatpush1.bf16.msra.mxu0 0
        %1303 = vmatprep.mubr.bf16.mxu0 0
        %1304 = vmatmul.mubr.bf16.gmra.mrb[0].mxu0 %v1266
        %v1305 = vpop.f32.mrb[0].mxu0
        %v1306 = vadd.f32 0.0, %v1305
        %v1307 = vpop.f32.mrb[0].mxu0
        %v1308 = vpop.f32.mrb[0].mxu0
        %v1309 = vpop.f32.mrb[0].mxu0
        %1310 = vdwg.mxu0
        %1311 = vrot.lane.b32.xlu0 %v906, 56
        %v1312 = vpop.permute.xlu0 %1311
        %v1314 = vsel %vm922, %v1262, 0
        %v1317 = vsel %vm1047, %v1312, 0
        %1319 = vmatprep.subr.bf16.mxu0 0
        %1320 = vmatpush1.bf16.msra.mxu0 %v1317
        %1321 = vmatprep.subr.bf16.mxu0 0
        %1322 = vmatpush1.bf16.msra.mxu0 0
        %1323 = vmatprep.subr.bf16.mxu0 0
        %1324 = vmatpush1.bf16.msra.mxu0 0
        %1325 = vmatprep.subr.bf16.mxu0 0
        %1326 = vmatpush1.bf16.msra.mxu0 0
        %1327 = vmatprep.subr.bf16.mxu0 0
        %1328 = vmatpush1.bf16.msra.mxu0 0
        %1329 = vmatprep.subr.bf16.mxu0 0
        %1330 = vmatpush1.bf16.msra.mxu0 0
        %1331 = vmatprep.subr.bf16.mxu0 0
        %1332 = vmatpush1.bf16.msra.mxu0 0
        %1333 = vmatprep.subr.bf16.mxu0 0
        %1334 = vmatpush1.bf16.msra.mxu0 0
        %1335 = vmatprep.subr.bf16.mxu0 0
        %1336 = vmatpush1.bf16.msra.mxu0 0
        %1337 = vmatprep.subr.bf16.mxu0 0
        %1338 = vmatpush1.bf16.msra.mxu0 0
        %1339 = vmatprep.subr.bf16.mxu0 0
        %1340 = vmatpush1.bf16.msra.mxu0 0
        %1341 = vmatprep.subr.bf16.mxu0 0
        %1342 = vmatpush1.bf16.msra.mxu0 0
        %1343 = vmatprep.subr.bf16.mxu0 0
        %1344 = vmatpush1.bf16.msra.mxu0 0
        %1345 = vmatprep.subr.bf16.mxu0 0
        %1346 = vmatpush1.bf16.msra.mxu0 0
        %1347 = vmatprep.subr.bf16.mxu0 0
        %1348 = vmatpush1.bf16.msra.mxu0 0
        %1349 = vmatprep.subr.bf16.mxu0 0
        %1350 = vmatpush1.bf16.msra.mxu0 0
        %1351 = vmatprep.mubr.bf16.mxu0 0
        %1352 = vmatmul.mubr.bf16.gmra.mrb[0].mxu0 %v1314
        %v1353 = vpop.f32.mrb[0].mxu0
        %v1354 = vadd.f32 0.0, %v1353
        %v1355 = vpop.f32.mrb[0].mxu0
        %v1356 = vpop.f32.mrb[0].mxu0
        %v1357 = vpop.f32.mrb[0].mxu0
        %1358 = vdwg.mxu0
        %1359 = vrot.lane.b32.xlu0 %v905, 112
        %v1360 = vpop.permute.xlu0 %1359
        %1361 = vrot.lane.b32.xlu0 %v905, 80
        %v1362 = vpop.permute.xlu0 %1361
        %v1364 = vsel %vm922, %v1360, 0
        %v1367 = vsel %vm922, %v1362, 0
        %1369 = vmatprep.subr.bf16.mxu0 0
        %1370 = vmatpush1.bf16.xpose.msra.mxu0 %v1367
        %1371 = vmatprep.subr.bf16.mxu0 0
        %1372 = vmatpush1.bf16.xpose.msra.mxu0 0
        %1373 = vmatprep.subr.bf16.mxu0 0
        %1374 = vmatpush1.bf16.xpose.msra.mxu0 0
        %1375 = vmatprep.subr.bf16.mxu0 0
        %1376 = vmatpush1.bf16.xpose.msra.mxu0 0
        %1377 = vmatprep.subr.bf16.mxu0 0
        %1378 = vmatpush1.bf16.xpose.msra.mxu0 0
        %1379 = vmatprep.subr.bf16.mxu0 0
        %1380 = vmatpush1.bf16.xpose.msra.mxu0 0
        %1381 = vmatprep.subr.bf16.mxu0 0
        %1382 = vmatpush1.bf16.xpose.msra.mxu0 0
        %1383 = vmatprep.subr.bf16.mxu0 0
        %1384 = vmatpush1.bf16.xpose.msra.mxu0 0
        %1385 = vmatprep.subr.bf16.mxu0 0
        %1386 = vmatpush1.bf16.xpose.msra.mxu0 0
        %1387 = vmatprep.subr.bf16.mxu0 0
        %1388 = vmatpush1.bf16.xpose.msra.mxu0 0
        %1389 = vmatprep.subr.bf16.mxu0 0
        %1390 = vmatpush1.bf16.xpose.msra.mxu0 0
        %1391 = vmatprep.subr.bf16.mxu0 0
        %1392 = vmatpush1.bf16.xpose.msra.mxu0 0
        %1393 = vmatprep.subr.bf16.mxu0 0
        %1394 = vmatpush1.bf16.xpose.msra.mxu0 0
        %1395 = vmatprep.subr.bf16.mxu0 0
        %1396 = vmatpush1.bf16.xpose.msra.mxu0 0
        %1397 = vmatprep.subr.bf16.mxu0 0
        %1398 = vmatpush1.bf16.xpose.msra.mxu0 0
        %1399 = vmatprep.subr.bf16.mxu0 0
        %1400 = vmatpush1.bf16.xpose.msra.mxu0 0
        %1401 = vmatprep.mubr.bf16.mxu0 0
        %1402 = vmatmul.mubr.bf16.gmra.mrb[0].mxu0 %v1364
        %v1403 = vpop.f32.mrb[0].mxu0
        %v1404 = vadd.f32 %v912, %v1403
        %v1405 = vpop.f32.mrb[0].mxu0
        %v1406 = vpop.f32.mrb[0].mxu0
        %v1407 = vpop.f32.mrb[0].mxu0
        %1408 = vdwg.mxu0
        %1409 = vrot.lane.b32.xlu0 %v906, 112
        %v1410 = vpop.permute.xlu0 %1409
        %1411 = vrot.lane.b32.xlu0 %v906, 80
        %v1412 = vpop.permute.xlu0 %1411
        %v1414 = vsel %vm922, %v1410, 0
        %v1417 = vsel %vm922, %v1412, 0
        %1419 = vmatprep.subr.bf16.mxu0 0
        %1420 = vmatpush1.bf16.xpose.msra.mxu0 %v1417
        %1421 = vmatprep.subr.bf16.mxu0 0
        %1422 = vmatpush1.bf16.xpose.msra.mxu0 0
        %1423 = vmatprep.subr.bf16.mxu0 0
        %1424 = vmatpush1.bf16.xpose.msra.mxu0 0
        %1425 = vmatprep.subr.bf16.mxu0 0
        %1426 = vmatpush1.bf16.xpose.msra.mxu0 0
        %1427 = vmatprep.subr.bf16.mxu0 0
        %1428 = vmatpush1.bf16.xpose.msra.mxu0 0
        %1429 = vmatprep.subr.bf16.mxu0 0
        %1430 = vmatpush1.bf16.xpose.msra.mxu0 0
        %1431 = vmatprep.subr.bf16.mxu0 0
        %1432 = vmatpush1.bf16.xpose.msra.mxu0 0
        %1433 = vmatprep.subr.bf16.mxu0 0
        %1434 = vmatpush1.bf16.xpose.msra.mxu0 0
        %1435 = vmatprep.subr.bf16.mxu0 0
        %1436 = vmatpush1.bf16.xpose.msra.mxu0 0
        %1437 = vmatprep.subr.bf16.mxu0 0
        %1438 = vmatpush1.bf16.xpose.msra.mxu0 0
        %1439 = vmatprep.subr.bf16.mxu0 0
        %1440 = vmatpush1.bf16.xpose.msra.mxu0 0
        %1441 = vmatprep.subr.bf16.mxu0 0
        %1442 = vmatpush1.bf16.xpose.msra.mxu0 0
        %1443 = vmatprep.subr.bf16.mxu0 0
        %1444 = vmatpush1.bf16.xpose.msra.mxu0 0
        %1445 = vmatprep.subr.bf16.mxu0 0
        %1446 = vmatpush1.bf16.xpose.msra.mxu0 0
        %1447 = vmatprep.subr.bf16.mxu0 0
        %1448 = vmatpush1.bf16.xpose.msra.mxu0 0
        %1449 = vmatprep.subr.bf16.mxu0 0
        %1450 = vmatpush1.bf16.xpose.msra.mxu0 0
        %1451 = vmatprep.mubr.bf16.mxu0 0
        %1452 = vmatmul.mubr.bf16.gmra.mrb[0].mxu0 %v1414
        %v1453 = vpop.f32.mrb[0].mxu0
        %v1454 = vadd.f32 %v916, %v1453
        %v1455 = vpop.f32.mrb[0].mxu0
        %v1456 = vpop.f32.mrb[0].mxu0
        %v1457 = vpop.f32.mrb[0].mxu0
        %1458 = vdwg.mxu0
        %v1459 = vsel %vm922, %v1404, -inf
        %1460 = vmax.xlane.f32.xlu0 %v1459
        %v1461 = vpop.xlane.xlu0 %1460
        %v1462 = vsel %vm922, %v1454, -inf
        %1463 = vmax.xlane.f32.xlu0 %v1462
        %v1464 = vpop.xlane.xlu0 %1463
        %v1465 = vsub.f32 %v1404, %v1461
        %v1466 = vsub.f32 %v1454, %v1464
        %v1467 = vmul.f32 %v1465, 1.442695
        %v1468 = vpow.pop %v1467
        %v1469 = vmul.f32 %v1466, 1.442695
        %v1470 = vpow.pop %v1469
        %v1471 = vsel %vm922, %v1468, 0.0
        %1472 = vadd.xlane.f32.xlu0 %v1471
        %v1473 = vpop.xlane.xlu0 %1472
        %v1474 = vsel %vm922, %v1470, 0.0
        %1475 = vadd.xlane.f32.xlu0 %v1474
        %v1476 = vpop.xlane.xlu0 %1475
        %v1477 = vrcp.pop %v1473
        %v1478 = vmul.f32 %v1468, %v1477
        %v1479 = vrcp.pop %v1476
        %v1480 = vmul.f32 %v1470, %v1479
        %v1481 = vpack.c.bf16 %v1478, %v1478
        %v1482 = vpack.c.bf16 %v1480, %v1480
        %1483 = vrot.lane.b32.xlu0 %v905, 48
        %v1484 = vpop.permute.xlu0 %1483
        %v1486 = vsel %vm922, %v1481, 0
        %v1489 = vsel %vm1047, %v1484, 0
        %1491 = vmatprep.subr.bf16.mxu0 0
        %1492 = vmatpush1.bf16.msra.mxu0 %v1489
        %1493 = vmatprep.subr.bf16.mxu0 0
        %1494 = vmatpush1.bf16.msra.mxu0 0
        %1495 = vmatprep.subr.bf16.mxu0 0
        %1496 = vmatpush1.bf16.msra.mxu0 0
        %1497 = vmatprep.subr.bf16.mxu0 0
        %1498 = vmatpush1.bf16.msra.mxu0 0
        %1499 = vmatprep.subr.bf16.mxu0 0
        %1500 = vmatpush1.bf16.msra.mxu0 0
        %1501 = vmatprep.subr.bf16.mxu0 0
        %1502 = vmatpush1.bf16.msra.mxu0 0
        %1503 = vmatprep.subr.bf16.mxu0 0
        %1504 = vmatpush1.bf16.msra.mxu0 0
        %1505 = vmatprep.subr.bf16.mxu0 0
        %1506 = vmatpush1.bf16.msra.mxu0 0
        %1507 = vmatprep.subr.bf16.mxu0 0
        %1508 = vmatpush1.bf16.msra.mxu0 0
        %1509 = vmatprep.subr.bf16.mxu0 0
        %1510 = vmatpush1.bf16.msra.mxu0 0
        %1511 = vmatprep.subr.bf16.mxu0 0
        %1512 = vmatpush1.bf16.msra.mxu0 0
        %1513 = vmatprep.subr.bf16.mxu0 0
        %1514 = vmatpush1.bf16.msra.mxu0 0
        %1515 = vmatprep.subr.bf16.mxu0 0
        %1516 = vmatpush1.bf16.msra.mxu0 0
        %1517 = vmatprep.subr.bf16.mxu0 0
        %1518 = vmatpush1.bf16.msra.mxu0 0
        %1519 = vmatprep.subr.bf16.mxu0 0
        %1520 = vmatpush1.bf16.msra.mxu0 0
        %1521 = vmatprep.subr.bf16.mxu0 0
        %1522 = vmatpush1.bf16.msra.mxu0 0
        %1523 = vmatprep.mubr.bf16.mxu0 0
        %1524 = vmatmul.mubr.bf16.gmra.mrb[0].mxu0 %v1486
        %v1525 = vpop.f32.mrb[0].mxu0
        %v1526 = vadd.f32 0.0, %v1525
        %v1527 = vpop.f32.mrb[0].mxu0
        %v1528 = vpop.f32.mrb[0].mxu0
        %v1529 = vpop.f32.mrb[0].mxu0
        %1530 = vdwg.mxu0
        %1531 = vrot.lane.b32.xlu0 %v906, 48
        %v1532 = vpop.permute.xlu0 %1531
        %v1534 = vsel %vm922, %v1482, 0
        %v1537 = vsel %vm1047, %v1532, 0
        %1539 = vmatprep.subr.bf16.mxu0 0
        %1540 = vmatpush1.bf16.msra.mxu0 %v1537
        %1541 = vmatprep.subr.bf16.mxu0 0
        %1542 = vmatpush1.bf16.msra.mxu0 0
        %1543 = vmatprep.subr.bf16.mxu0 0
        %1544 = vmatpush1.bf16.msra.mxu0 0
        %1545 = vmatprep.subr.bf16.mxu0 0
        %1546 = vmatpush1.bf16.msra.mxu0 0
        %1547 = vmatprep.subr.bf16.mxu0 0
        %1548 = vmatpush1.bf16.msra.mxu0 0
        %1549 = vmatprep.subr.bf16.mxu0 0
        %1550 = vmatpush1.bf16.msra.mxu0 0
        %1551 = vmatprep.subr.bf16.mxu0 0
        %1552 = vmatpush1.bf16.msra.mxu0 0
        %1553 = vmatprep.subr.bf16.mxu0 0
        %1554 = vmatpush1.bf16.msra.mxu0 0
        %1555 = vmatprep.subr.bf16.mxu0 0
        %1556 = vmatpush1.bf16.msra.mxu0 0
        %1557 = vmatprep.subr.bf16.mxu0 0
        %1558 = vmatpush1.bf16.msra.mxu0 0
        %1559 = vmatprep.subr.bf16.mxu0 0
        %1560 = vmatpush1.bf16.msra.mxu0 0
        %1561 = vmatprep.subr.bf16.mxu0 0
        %1562 = vmatpush1.bf16.msra.mxu0 0
        %1563 = vmatprep.subr.bf16.mxu0 0
        %1564 = vmatpush1.bf16.msra.mxu0 0
        %1565 = vmatprep.subr.bf16.mxu0 0
        %1566 = vmatpush1.bf16.msra.mxu0 0
        %1567 = vmatprep.subr.bf16.mxu0 0
        %1568 = vmatpush1.bf16.msra.mxu0 0
        %1569 = vmatprep.subr.bf16.mxu0 0
        %1570 = vmatpush1.bf16.msra.mxu0 0
        %1571 = vmatprep.mubr.bf16.mxu0 0
        %1572 = vmatmul.mubr.bf16.gmra.mrb[0].mxu0 %v1534
        %v1573 = vpop.f32.mrb[0].mxu0
        %v1574 = vadd.f32 0.0, %v1573
        %v1575 = vpop.f32.mrb[0].mxu0
        %v1576 = vpop.f32.mrb[0].mxu0
        %v1577 = vpop.f32.mrb[0].mxu0
        %1578 = vdwg.mxu0
        %1579 = vrot.lane.b32.xlu0 %v905, 104
        %v1580 = vpop.permute.xlu0 %1579
        %1581 = vrot.lane.b32.xlu0 %v905, 72
        %v1582 = vpop.permute.xlu0 %1581
        %v1584 = vsel %vm922, %v1580, 0
        %v1587 = vsel %vm922, %v1582, 0
        %1589 = vmatprep.subr.bf16.mxu0 0
        %1590 = vmatpush1.bf16.xpose.msra.mxu0 %v1587
        %1591 = vmatprep.subr.bf16.mxu0 0
        %1592 = vmatpush1.bf16.xpose.msra.mxu0 0
        %1593 = vmatprep.subr.bf16.mxu0 0
        %1594 = vmatpush1.bf16.xpose.msra.mxu0 0
        %1595 = vmatprep.subr.bf16.mxu0 0
        %1596 = vmatpush1.bf16.xpose.msra.mxu0 0
        %1597 = vmatprep.subr.bf16.mxu0 0
        %1598 = vmatpush1.bf16.xpose.msra.mxu0 0
        %1599 = vmatprep.subr.bf16.mxu0 0
        %1600 = vmatpush1.bf16.xpose.msra.mxu0 0
        %1601 = vmatprep.subr.bf16.mxu0 0
        %1602 = vmatpush1.bf16.xpose.msra.mxu0 0
        %1603 = vmatprep.subr.bf16.mxu0 0
        %1604 = vmatpush1.bf16.xpose.msra.mxu0 0
        %1605 = vmatprep.subr.bf16.mxu0 0
        %1606 = vmatpush1.bf16.xpose.msra.mxu0 0
        %1607 = vmatprep.subr.bf16.mxu0 0
        %1608 = vmatpush1.bf16.xpose.msra.mxu0 0
        %1609 = vmatprep.subr.bf16.mxu0 0
        %1610 = vmatpush1.bf16.xpose.msra.mxu0 0
        %1611 = vmatprep.subr.bf16.mxu0 0
        %1612 = vmatpush1.bf16.xpose.msra.mxu0 0
        %1613 = vmatprep.subr.bf16.mxu0 0
        %1614 = vmatpush1.bf16.xpose.msra.mxu0 0
        %1615 = vmatprep.subr.bf16.mxu0 0
        %1616 = vmatpush1.bf16.xpose.msra.mxu0 0
        %1617 = vmatprep.subr.bf16.mxu0 0
        %1618 = vmatpush1.bf16.xpose.msra.mxu0 0
        %1619 = vmatprep.subr.bf16.mxu0 0
        %1620 = vmatpush1.bf16.xpose.msra.mxu0 0
        %1621 = vmatprep.mubr.bf16.mxu0 0
        %1622 = vmatmul.mubr.bf16.gmra.mrb[0].mxu0 %v1584
        %v1623 = vpop.f32.mrb[0].mxu0
        %v1624 = vadd.f32 %v912, %v1623
        %v1625 = vpop.f32.mrb[0].mxu0
        %v1626 = vpop.f32.mrb[0].mxu0
        %v1627 = vpop.f32.mrb[0].mxu0
        %1628 = vdwg.mxu0
        %1629 = vrot.lane.b32.xlu0 %v906, 104
        %v1630 = vpop.permute.xlu0 %1629
        %1631 = vrot.lane.b32.xlu0 %v906, 72
        %v1632 = vpop.permute.xlu0 %1631
        %v1634 = vsel %vm922, %v1630, 0
        %v1637 = vsel %vm922, %v1632, 0
        %1639 = vmatprep.subr.bf16.mxu0 0
        %1640 = vmatpush1.bf16.xpose.msra.mxu0 %v1637
        %1641 = vmatprep.subr.bf16.mxu0 0
        %1642 = vmatpush1.bf16.xpose.msra.mxu0 0
        %1643 = vmatprep.subr.bf16.mxu0 0
        %1644 = vmatpush1.bf16.xpose.msra.mxu0 0
        %1645 = vmatprep.subr.bf16.mxu0 0
        %1646 = vmatpush1.bf16.xpose.msra.mxu0 0
        %1647 = vmatprep.subr.bf16.mxu0 0
        %1648 = vmatpush1.bf16.xpose.msra.mxu0 0
        %1649 = vmatprep.subr.bf16.mxu0 0
        %1650 = vmatpush1.bf16.xpose.msra.mxu0 0
        %1651 = vmatprep.subr.bf16.mxu0 0
        %1652 = vmatpush1.bf16.xpose.msra.mxu0 0
        %1653 = vmatprep.subr.bf16.mxu0 0
        %1654 = vmatpush1.bf16.xpose.msra.mxu0 0
        %1655 = vmatprep.subr.bf16.mxu0 0
        %1656 = vmatpush1.bf16.xpose.msra.mxu0 0
        %1657 = vmatprep.subr.bf16.mxu0 0
        %1658 = vmatpush1.bf16.xpose.msra.mxu0 0
        %1659 = vmatprep.subr.bf16.mxu0 0
        %1660 = vmatpush1.bf16.xpose.msra.mxu0 0
        %1661 = vmatprep.subr.bf16.mxu0 0
        %1662 = vmatpush1.bf16.xpose.msra.mxu0 0
        %1663 = vmatprep.subr.bf16.mxu0 0
        %1664 = vmatpush1.bf16.xpose.msra.mxu0 0
        %1665 = vmatprep.subr.bf16.mxu0 0
        %1666 = vmatpush1.bf16.xpose.msra.mxu0 0
        %1667 = vmatprep.subr.bf16.mxu0 0
        %1668 = vmatpush1.bf16.xpose.msra.mxu0 0
        %1669 = vmatprep.subr.bf16.mxu0 0
        %1670 = vmatpush1.bf16.xpose.msra.mxu0 0
        %1671 = vmatprep.mubr.bf16.mxu0 0
        %1672 = vmatmul.mubr.bf16.gmra.mrb[0].mxu0 %v1634
        %v1673 = vpop.f32.mrb[0].mxu0
        %v1674 = vadd.f32 %v916, %v1673
        %v1675 = vpop.f32.mrb[0].mxu0
        %v1676 = vpop.f32.mrb[0].mxu0
        %v1677 = vpop.f32.mrb[0].mxu0
        %1678 = vdwg.mxu0
        %v1679 = vsel %vm922, %v1624, -inf
        %1680 = vmax.xlane.f32.xlu0 %v1679
        %v1681 = vpop.xlane.xlu0 %1680
        %v1682 = vsel %vm922, %v1674, -inf
        %1683 = vmax.xlane.f32.xlu0 %v1682
        %v1684 = vpop.xlane.xlu0 %1683
        %v1685 = vsub.f32 %v1624, %v1681
        %v1686 = vsub.f32 %v1674, %v1684
        %v1687 = vmul.f32 %v1685, 1.442695
        %v1688 = vpow.pop %v1687
        %v1689 = vmul.f32 %v1686, 1.442695
        %v1690 = vpow.pop %v1689
        %v1691 = vsel %vm922, %v1688, 0.0
        %1692 = vadd.xlane.f32.xlu0 %v1691
        %v1693 = vpop.xlane.xlu0 %1692
        %v1694 = vsel %vm922, %v1690, 0.0
        %1695 = vadd.xlane.f32.xlu0 %v1694
        %v1696 = vpop.xlane.xlu0 %1695
        %v1697 = vrcp.pop %v1693
        %v1698 = vmul.f32 %v1688, %v1697
        %v1699 = vrcp.pop %v1696
        %v1700 = vmul.f32 %v1690, %v1699
        %v1701 = vpack.c.bf16 %v1698, %v1698
        %v1702 = vpack.c.bf16 %v1700, %v1700
        %1703 = vrot.lane.b32.xlu0 %v905, 40
        %v1704 = vpop.permute.xlu0 %1703
        %v1706 = vsel %vm922, %v1701, 0
        %v1709 = vsel %vm1047, %v1704, 0
        %1711 = vmatprep.subr.bf16.mxu0 0
        %1712 = vmatpush1.bf16.msra.mxu0 %v1709
        %1713 = vmatprep.subr.bf16.mxu0 0
        %1714 = vmatpush1.bf16.msra.mxu0 0
        %1715 = vmatprep.subr.bf16.mxu0 0
        %1716 = vmatpush1.bf16.msra.mxu0 0
        %1717 = vmatprep.subr.bf16.mxu0 0
        %1718 = vmatpush1.bf16.msra.mxu0 0
        %1719 = vmatprep.subr.bf16.mxu0 0
        %1720 = vmatpush1.bf16.msra.mxu0 0
        %1721 = vmatprep.subr.bf16.mxu0 0
        %1722 = vmatpush1.bf16.msra.mxu0 0
        %1723 = vmatprep.subr.bf16.mxu0 0
        %1724 = vmatpush1.bf16.msra.mxu0 0
        %1725 = vmatprep.subr.bf16.mxu0 0
        %1726 = vmatpush1.bf16.msra.mxu0 0
        %1727 = vmatprep.subr.bf16.mxu0 0
        %1728 = vmatpush1.bf16.msra.mxu0 0
        %1729 = vmatprep.subr.bf16.mxu0 0
        %1730 = vmatpush1.bf16.msra.mxu0 0
        %1731 = vmatprep.subr.bf16.mxu0 0
        %1732 = vmatpush1.bf16.msra.mxu0 0
        %1733 = vmatprep.subr.bf16.mxu0 0
        %1734 = vmatpush1.bf16.msra.mxu0 0
        %1735 = vmatprep.subr.bf16.mxu0 0
        %1736 = vmatpush1.bf16.msra.mxu0 0
        %1737 = vmatprep.subr.bf16.mxu0 0
        %1738 = vmatpush1.bf16.msra.mxu0 0
        %1739 = vmatprep.subr.bf16.mxu0 0
        %1740 = vmatpush1.bf16.msra.mxu0 0
        %1741 = vmatprep.subr.bf16.mxu0 0
        %1742 = vmatpush1.bf16.msra.mxu0 0
        %1743 = vmatprep.mubr.bf16.mxu0 0
        %1744 = vmatmul.mubr.bf16.gmra.mrb[0].mxu0 %v1706
        %v1745 = vpop.f32.mrb[0].mxu0
        %v1746 = vadd.f32 0.0, %v1745
        %v1747 = vpop.f32.mrb[0].mxu0
        %v1748 = vpop.f32.mrb[0].mxu0
        %v1749 = vpop.f32.mrb[0].mxu0
        %1750 = vdwg.mxu0
        %1751 = vrot.lane.b32.xlu0 %v906, 40
        %v1752 = vpop.permute.xlu0 %1751
        %v1754 = vsel %vm922, %v1702, 0
        %v1757 = vsel %vm1047, %v1752, 0
        %1759 = vmatprep.subr.bf16.mxu0 0
        %1760 = vmatpush1.bf16.msra.mxu0 %v1757
        %1761 = vmatprep.subr.bf16.mxu0 0
        %1762 = vmatpush1.bf16.msra.mxu0 0
        %1763 = vmatprep.subr.bf16.mxu0 0
        %1764 = vmatpush1.bf16.msra.mxu0 0
        %1765 = vmatprep.subr.bf16.mxu0 0
        %1766 = vmatpush1.bf16.msra.mxu0 0
        %1767 = vmatprep.subr.bf16.mxu0 0
        %1768 = vmatpush1.bf16.msra.mxu0 0
        %1769 = vmatprep.subr.bf16.mxu0 0
        %1770 = vmatpush1.bf16.msra.mxu0 0
        %1771 = vmatprep.subr.bf16.mxu0 0
        %1772 = vmatpush1.bf16.msra.mxu0 0
        %1773 = vmatprep.subr.bf16.mxu0 0
        %1774 = vmatpush1.bf16.msra.mxu0 0
        %1775 = vmatprep.subr.bf16.mxu0 0
        %1776 = vmatpush1.bf16.msra.mxu0 0
        %1777 = vmatprep.subr.bf16.mxu0 0
        %1778 = vmatpush1.bf16.msra.mxu0 0
        %1779 = vmatprep.subr.bf16.mxu0 0
        %1780 = vmatpush1.bf16.msra.mxu0 0
        %1781 = vmatprep.subr.bf16.mxu0 0
        %1782 = vmatpush1.bf16.msra.mxu0 0
        %1783 = vmatprep.subr.bf16.mxu0 0
        %1784 = vmatpush1.bf16.msra.mxu0 0
        %1785 = vmatprep.subr.bf16.mxu0 0
        %1786 = vmatpush1.bf16.msra.mxu0 0
        %1787 = vmatprep.subr.bf16.mxu0 0
        %1788 = vmatpush1.bf16.msra.mxu0 0
        %1789 = vmatprep.subr.bf16.mxu0 0
        %1790 = vmatpush1.bf16.msra.mxu0 0
        %1791 = vmatprep.mubr.bf16.mxu0 0
        %1792 = vmatmul.mubr.bf16.gmra.mrb[0].mxu0 %v1754
        %v1793 = vpop.f32.mrb[0].mxu0
        %v1794 = vadd.f32 0.0, %v1793
        %v1795 = vpop.f32.mrb[0].mxu0
        %v1796 = vpop.f32.mrb[0].mxu0
        %v1797 = vpop.f32.mrb[0].mxu0
        %1798 = vdwg.mxu0
        %1801 = vrot.lane.b32.xlu0 %v1306, 8
        %v1802 = vpop.permute.xlu0 %1801
        %1803 = vrot.lane.b32.xlu0 %v1354, 8
        %v1804 = vpop.permute.xlu0 %1803
        %1809 = vrot.lane.b32.xlu0 %v1526, 16
        %v1810 = vpop.permute.xlu0 %1809
        %1811 = vrot.lane.b32.xlu0 %v1574, 16
        %v1812 = vpop.permute.xlu0 %1811
        %1817 = vrot.lane.b32.xlu0 %v1746, 24
        %v1818 = vpop.permute.xlu0 %1817
        %1819 = vrot.lane.b32.xlu0 %v1794, 24
        %v1820 = vpop.permute.xlu0 %1819
        %v1823 = vsel %vm922, %v1086, %v1802
        %v1824 = vsel %vm922, %v1134, %v1804
        %vm1825 = vcmask 130048
        %v1826 = vsel %vm1825, %v1823, %v1810
        %v1827 = vsel %vm1825, %v1824, %v1812
        %vm1828 = vcmask 195584
        %v1829 = vsel %vm1828, %v1826, %v1818
        %v1830 = vsel %vm1828, %v1827, %v1820
        %v1831 = vpack.c.bf16 %v1830, %v1829
        %v1832 = vld [vmem:[%s796] sm:$0xf]
        %v1833 = vld [vmem:[%s796 + $0x4] sm:$0xf]
        %v1834 = vld [vmem:[%s796 + $0x8] sm:$0xf]
        %v1835 = vld [vmem:[%s796 + $0xc] sm:$0xf]
        %v1836 = vld [vmem:[%s651] sm:$0x1]
        %v1838 = vlaneseq
        %v1839 = vshrl.u32 %v1838, 7
        %v1840 = vsub.s32 0, %v1839
        %v1841 = vrot.slane %v1836, %v1840
        %v1847 = vunpack.c.l.b16 %v1832
        %v1848 = vunpack.c.l.b16 %v1833
        %v1849 = vunpack.c.l.b16 %v1834
        %v1850 = vunpack.c.l.b16 %v1835
        %v1851 = vpack.c.b16 %v1848, %v1847
        %v1852 = vpack.c.b16 %v1850, %v1849
        %v1856 = vsel %vm860, %v1831, 0
        %1858 = vmatprep.subr.bf16.mxu0 0
        %1859 = vmatpush1.bf16.msra.mxu0 %v1851
        %1860 = vmatprep.subr.bf16.mxu0 0
        %1861 = vmatpush1.bf16.msra.mxu0 %v1852
        %1862 = vmatprep.subr.bf16.mxu0 0
        %1863 = vmatpush1.bf16.msra.mxu0 0
        %1864 = vmatprep.subr.bf16.mxu0 0
        %1865 = vmatpush1.bf16.msra.mxu0 0
        %1866 = vmatprep.subr.bf16.mxu0 0
        %1867 = vmatpush1.bf16.msra.mxu0 0
        %1868 = vmatprep.subr.bf16.mxu0 0
        %1869 = vmatpush1.bf16.msra.mxu0 0
        %1870 = vmatprep.subr.bf16.mxu0 0
        %1871 = vmatpush1.bf16.msra.mxu0 0
        %1872 = vmatprep.subr.bf16.mxu0 0
        %1873 = vmatpush1.bf16.msra.mxu0 0
        %1874 = vmatprep.subr.bf16.mxu0 0
        %1875 = vmatpush1.bf16.msra.mxu0 0
        %1876 = vmatprep.subr.bf16.mxu0 0
        %1877 = vmatpush1.bf16.msra.mxu0 0
        %1878 = vmatprep.subr.bf16.mxu0 0
        %1879 = vmatpush1.bf16.msra.mxu0 0
        %1880 = vmatprep.subr.bf16.mxu0 0
        %1881 = vmatpush1.bf16.msra.mxu0 0
        %1882 = vmatprep.subr.bf16.mxu0 0
        %1883 = vmatpush1.bf16.msra.mxu0 0
        %1884 = vmatprep.subr.bf16.mxu0 0
        %1885 = vmatpush1.bf16.msra.mxu0 0
        %1886 = vmatprep.subr.bf16.mxu0 0
        %1887 = vmatpush1.bf16.msra.mxu0 0
        %1888 = vmatprep.subr.bf16.mxu0 0
        %1889 = vmatpush1.bf16.msra.mxu0 0
        %1890 = vmatprep.mubr.bf16.mxu0 0
        %1891 = vmatmul.mubr.bf16.gmra.mrb[0].mxu0 %v1856
        %v1892 = vpop.f32.mrb[0].mxu0
        %v1893 = vadd.f32 %v1841, %v1892
        %v1894 = vpop.f32.mrb[0].mxu0
        %v1895 = vpop.f32.mrb[0].mxu0
        %v1896 = vadd.f32 %v1841, %v1895
        %v1897 = vpop.f32.mrb[0].mxu0
        %1898 = vdwg.mxu0
        %1900 = vset.pattern.permute.xlu0 0
        %1901 = vperm.xlu0 %1900, %v834
        %v1902 = vpop.permute.xlu0 %1901
        %1905 = vset.pattern.permute.xlu0 0
        %1906 = vperm.xlu0 %1905, %v835
        %v1907 = vpop.permute.xlu0 %1906
        %v1909 = vmul.f32 %v1893, %v1902
        %v1910 = vmul.f32 %v1896, %v1907
        %v1911 = vadd.f32 %v830, %v1909
        %v1912 = vadd.f32 %v831, %v1910
        %v1913 = vld [vmem:[%s659] sm:$0x1]
        %v1914 = vld [vmem:[%s667] sm:$0x1]
        %v1915 = vsel %vm860, %v1911, 0.0
        %1916 = vadd.xlane.f32.xlu0 %v1915
        %v1917 = vpop.xlane.xlu0 %1916
        %v1918 = vsel %vm860, %v1912, 0.0
        %1919 = vadd.xlane.f32.xlu0 %v1918
        %v1920 = vpop.xlane.xlu0 %1919
        %v1921 = vrcp.pop 32.0
        %v1922 = vmul.f32 %v1917, %v1921
        %v1923 = vmul.f32 %v1920, %v1921
        %v1924 = vsub.f32 %v1911, %v1922
        %v1925 = vsub.f32 %v1912, %v1923
        %v1926 = vmul.f32 %v1924, %v1924
        %v1927 = vmul.f32 %v1925, %v1925
        %v1928 = vsel %vm860, %v1926, 0.0
        %1929 = vadd.xlane.f32.xlu0 %v1928
        %v1930 = vpop.xlane.xlu0 %1929
        %v1931 = vsel %vm860, %v1927, 0.0
        %1932 = vadd.xlane.f32.xlu0 %v1931
        %v1933 = vpop.xlane.xlu0 %1932
        %v1934 = vmul.f32 %v1930, %v1921
        %v1935 = vmul.f32 %v1933, %v1921
        %v1936 = vadd.f32 %v1934, 1e-05
        %v1937 = vadd.f32 %v1935, 1e-05
        %v1938 = vrsqrt.pop %v1936
        %v1939 = vrsqrt.pop %v1937
        %v1940 = vmul.f32 %v1924, %v1938
        %v1941 = vmul.f32 %v1925, %v1939
        %v1943 = vlaneseq
        %v1944 = vshrl.u32 %v1943, 7
        %v1945 = vsub.s32 0, %v1944
        %v1946 = vrot.slane %v1913, %v1945
        %v1948 = vmul.f32 %v1940, %v1946
        %v1949 = vmul.f32 %v1941, %v1946
        %v1951 = vlaneseq
        %v1952 = vshrl.u32 %v1951, 7
        %v1953 = vsub.s32 0, %v1952
        %v1954 = vrot.slane %v1914, %v1953
        %v1956 = vadd.f32 %v1948, %v1954
        %v1957 = vadd.f32 %v1949, %v1954
        %v1958 = vpack.c.bf16 %v1957, %v1956
        %v1959 = vld [vmem:[%s801] sm:$0xf]
        %v1960 = vld [vmem:[%s801 + $0x4] sm:$0xf]
        %v1961 = vld [vmem:[%s801 + $0x8] sm:$0xf]
        %v1962 = vld [vmem:[%s801 + $0xc] sm:$0xf]
        %v1963 = vld [vmem:[%s804] sm:$0x1]
        %v1965 = vlaneseq
        %v1966 = vshrl.u32 %v1965, 7
        %v1967 = vsub.s32 0, %v1966
        %v1968 = vrot.slane %v1963, %v1967
        %v1974 = vunpack.c.l.b16 %v1959
        %v1975 = vunpack.c.l.b16 %v1960
        %v1976 = vunpack.c.l.b16 %v1961
        %v1977 = vunpack.c.l.b16 %v1962
        %v1978 = vpack.c.b16 %v1975, %v1974
        %v1979 = vpack.c.b16 %v1977, %v1976
        %v1983 = vsel %vm860, %v1958, 0
        %1985 = vmatprep.subr.bf16.mxu0 0
        %1986 = vmatpush1.bf16.msra.mxu0 %v1978
        %1987 = vmatprep.subr.bf16.mxu0 0
        %1988 = vmatpush1.bf16.msra.mxu0 %v1979
        %1989 = vmatprep.subr.bf16.mxu0 0
        %1990 = vmatpush1.bf16.msra.mxu0 0
        %1991 = vmatprep.subr.bf16.mxu0 0
        %1992 = vmatpush1.bf16.msra.mxu0 0
        %1993 = vmatprep.subr.bf16.mxu0 0
        %1994 = vmatpush1.bf16.msra.mxu0 0
        %1995 = vmatprep.subr.bf16.mxu0 0
        %1996 = vmatpush1.bf16.msra.mxu0 0
        %1997 = vmatprep.subr.bf16.mxu0 0
        %1998 = vmatpush1.bf16.msra.mxu0 0
        %1999 = vmatprep.subr.bf16.mxu0 0
        %2000 = vmatpush1.bf16.msra.mxu0 0
        %2001 = vmatprep.subr.bf16.mxu0 0
        %2002 = vmatpush1.bf16.msra.mxu0 0
        %2003 = vmatprep.subr.bf16.mxu0 0
        %2004 = vmatpush1.bf16.msra.mxu0 0
        %2005 = vmatprep.subr.bf16.mxu0 0
        %2006 = vmatpush1.bf16.msra.mxu0 0
        %2007 = vmatprep.subr.bf16.mxu0 0
        %2008 = vmatpush1.bf16.msra.mxu0 0
        %2009 = vmatprep.subr.bf16.mxu0 0
        %2010 = vmatpush1.bf16.msra.mxu0 0
        %2011 = vmatprep.subr.bf16.mxu0 0
        %2012 = vmatpush1.bf16.msra.mxu0 0
        %2013 = vmatprep.subr.bf16.mxu0 0
        %2014 = vmatpush1.bf16.msra.mxu0 0
        %2015 = vmatprep.subr.bf16.mxu0 0
        %2016 = vmatpush1.bf16.msra.mxu0 0
        %2017 = vmatprep.mubr.bf16.mxu0 0
        %2018 = vmatmul.mubr.bf16.gmra.mrb[0].mxu0 %v1983
        %v2019 = vpop.f32.mrb[0].mxu0
        %v2020 = vadd.f32 %v1968, %v2019
        %v2021 = vpop.f32.mrb[0].mxu0
        %v2022 = vpop.f32.mrb[0].mxu0
        %v2023 = vadd.f32 %v1968, %v2022
        %v2024 = vpop.f32.mrb[0].mxu0
        %2025 = vdwg.mxu0
        %vm2026 = vcmp.gt.f32.partialorder %v2020, 0.0
        %vm2027 = vcmp.gt.f32.partialorder %v2023, 0.0
        %v2028 = vmul.f32 %v2020, 0.01
        %v2029 = vmul.f32 %v2023, 0.01
        %v2030 = vsel %vm2026, %v2020, %v2028
        %v2031 = vsel %vm2027, %v2023, %v2029
        %v2032 = vpack.c.bf16 %v2031, %v2030
        %v2033 = vld [vmem:[%s809] sm:$0xf]
        %v2034 = vld [vmem:[%s809 + $0x4] sm:$0xf]
        %v2035 = vld [vmem:[%s809 + $0x8] sm:$0xf]
        %v2036 = vld [vmem:[%s809 + $0xc] sm:$0xf]
        %v2037 = vld [vmem:[%s809 + $0x10] sm:$0xf]
        %v2038 = vld [vmem:[%s809 + $0x14] sm:$0xf]
        %v2039 = vld [vmem:[%s809 + $0x18] sm:$0xf]
        %v2040 = vld [vmem:[%s809 + $0x1c] sm:$0xf]
        %v2041 = vld [vmem:[%s812] sm:$0x1]
        %v2043 = vlaneseq
        %v2044 = vshrl.u32 %v2043, 7
        %v2045 = vsub.s32 0, %v2044
        %v2046 = vrot.slane %v2041, %v2045
        %v2056 = vunpack.c.l.b16 %v2033
        %v2057 = vunpack.c.l.b16 %v2034
        %v2058 = vunpack.c.l.b16 %v2035
        %v2059 = vunpack.c.l.b16 %v2036
        %v2060 = vunpack.c.l.b16 %v2037
        %v2061 = vunpack.c.l.b16 %v2038
        %v2062 = vunpack.c.l.b16 %v2039
        %v2063 = vunpack.c.l.b16 %v2040
        %v2064 = vpack.c.b16 %v2057, %v2056
        %v2065 = vpack.c.b16 %v2059, %v2058
        %v2066 = vpack.c.b16 %v2061, %v2060
        %v2067 = vpack.c.b16 %v2063, %v2062
        %vm2072 = vcmask 523264
        %v2074 = vsel %vm2072, %v2032, 0
        %2076 = vmatprep.subr.bf16.mxu0 0
        %2077 = vmatpush1.bf16.msra.mxu0 %v2064
        %2078 = vmatprep.subr.bf16.mxu0 0
        %2079 = vmatpush1.bf16.msra.mxu0 %v2065
        %2080 = vmatprep.subr.bf16.mxu0 0
        %2081 = vmatpush1.bf16.msra.mxu0 %v2066
        %2082 = vmatprep.subr.bf16.mxu0 0
        %2083 = vmatpush1.bf16.msra.mxu0 %v2067
        %2084 = vmatprep.subr.bf16.mxu0 0
        %2085 = vmatpush1.bf16.msra.mxu0 0
        %2086 = vmatprep.subr.bf16.mxu0 0
        %2087 = vmatpush1.bf16.msra.mxu0 0
        %2088 = vmatprep.subr.bf16.mxu0 0
        %2089 = vmatpush1.bf16.msra.mxu0 0
        %2090 = vmatprep.subr.bf16.mxu0 0
        %2091 = vmatpush1.bf16.msra.mxu0 0
        %2092 = vmatprep.subr.bf16.mxu0 0
        %2093 = vmatpush1.bf16.msra.mxu0 0
        %2094 = vmatprep.subr.bf16.mxu0 0
        %2095 = vmatpush1.bf16.msra.mxu0 0
        %2096 = vmatprep.subr.bf16.mxu0 0
        %2097 = vmatpush1.bf16.msra.mxu0 0
        %2098 = vmatprep.subr.bf16.mxu0 0
        %2099 = vmatpush1.bf16.msra.mxu0 0
        %2100 = vmatprep.subr.bf16.mxu0 0
        %2101 = vmatpush1.bf16.msra.mxu0 0
        %2102 = vmatprep.subr.bf16.mxu0 0
        %2103 = vmatpush1.bf16.msra.mxu0 0
        %2104 = vmatprep.subr.bf16.mxu0 0
        %2105 = vmatpush1.bf16.msra.mxu0 0
        %2106 = vmatprep.subr.bf16.mxu0 0
        %2107 = vmatpush1.bf16.msra.mxu0 0
        %2108 = vmatprep.mubr.bf16.mxu0 0
        %2109 = vmatmul.mubr.bf16.gmra.mrb[0].mxu0 %v2074
        %v2110 = vpop.f32.mrb[0].mxu0
        %v2111 = vadd.f32 %v2046, %v2110
        %v2112 = vpop.f32.mrb[0].mxu0
        %v2113 = vpop.f32.mrb[0].mxu0
        %v2114 = vadd.f32 %v2046, %v2113
        %v2115 = vpop.f32.mrb[0].mxu0
        %2116 = vdwg.mxu0
        %v2117 = vmul.f32 %v2111, %v1902
        %v2118 = vmul.f32 %v2114, %v1907
        %v2119 = vadd.f32 %v1956, %v2117
        %v2120 = vadd.f32 %v1957, %v2118
        %v2121 = vld [vmem:[%s815] sm:$0x1]
        %v2122 = vld [vmem:[%s818] sm:$0x1]
        %v2123 = vsel %vm860, %v2119, 0.0
        %2124 = vadd.xlane.f32.xlu0 %v2123
        %v2125 = vpop.xlane.xlu0 %2124
        %v2126 = vsel %vm860, %v2120, 0.0
        %2127 = vadd.xlane.f32.xlu0 %v2126
        %v2128 = vpop.xlane.xlu0 %2127
        %v2129 = vmul.f32 %v2125, %v1921
        %v2130 = vmul.f32 %v2128, %v1921
        %v2131 = vsub.f32 %v2119, %v2129
        %v2132 = vsub.f32 %v2120, %v2130
        %v2133 = vmul.f32 %v2131, %v2131
        %v2134 = vmul.f32 %v2132, %v2132
        %v2135 = vsel %vm860, %v2133, 0.0
        %2136 = vadd.xlane.f32.xlu0 %v2135
        %v2137 = vpop.xlane.xlu0 %2136
        %v2138 = vsel %vm860, %v2134, 0.0
        %2139 = vadd.xlane.f32.xlu0 %v2138
        %v2140 = vpop.xlane.xlu0 %2139
        %v2141 = vmul.f32 %v2137, %v1921
        %v2142 = vmul.f32 %v2140, %v1921
        %v2143 = vadd.f32 %v2141, 1e-05
        %v2144 = vadd.f32 %v2142, 1e-05
        %v2145 = vrsqrt.pop %v2143
        %v2146 = vrsqrt.pop %v2144
        %v2147 = vmul.f32 %v2131, %v2145
        %v2148 = vmul.f32 %v2132, %v2146
        %v2150 = vlaneseq
        %v2151 = vshrl.u32 %v2150, 7
        %v2152 = vsub.s32 0, %v2151
        %v2153 = vrot.slane %v2121, %v2152
        %v2155 = vmul.f32 %v2147, %v2153
        %v2156 = vmul.f32 %v2148, %v2153
        %v2158 = vlaneseq
        %v2159 = vshrl.u32 %v2158, 7
        %v2160 = vsub.s32 0, %v2159
        %v2161 = vrot.slane %v2122, %v2160
        %v2163 = vadd.f32 %v2155, %v2161
        %v2164 = vadd.f32 %v2156, %v2161
        %2165 = vst.msk [vmem:[%s770] sm:$0xff] %vm860, %v2163
        %2166 = vst.msk [vmem:[%s770 + $0x8] sm:$0xff] %vm860, %v2164
        %s2167 = sand.u32 %s448, 1
        %s2168 = scalar_lea.sflag [#allocation4], %s2167
        %s2169 = sand.u32 %s448, 1
        %s2170 = smul.addr %s2169, 16
        %s2171 = scalar_lea.vmem [#allocation10], %s2170
        // Predicated region
        $region101: #{tpu_custom_call.1} parent=79 // pred_check
          %p2172 = pneg %p458
        $region102: #{tpu_custom_call.1} parent=79 // pred_check_branch
          %2174 = sbr.rel (%p2172) target = $region104
        $region103: #{tpu_custom_call.1} parent=79 // pred_region
          %s2175 = smul.u32 2, %s42
          %s2177 = ssub.s32 256, 256
          %2178 = vsyncadd %s2168, %s2177
          %s2179 = smul.addr %s2175, 128
          %s2180 = scalar_lea.hbm %s15, %s2179
          %s2181 = sshll.u32 %s2171, 4
          %s2182 = int_to_ptr.vmem [resolvable:$true] %s2181
          %2187 = dma.vmem_to_hbm [thread:$0]  %s2182, 256, %s2180, %s2168, 128, 128, 8
        $region104: #{tpu_custom_call.1} parent=79 // pred_fallthru
          _
      $region80: #{tpu_custom_call.1} parent=5 // pred_fallthru
        _
      %p2188 = scmp.le.s32.totalorder 2, %s33
      // Predicated region
      $region105: #{tpu_custom_call.1} parent=5 // pred_check
        %p2189 = pneg %p2188
      $region106: #{tpu_custom_call.1} parent=5 // pred_check_branch
        %2191 = sbr.rel (%p2189) target = $region108
      $region107: #{tpu_custom_call.1} parent=5 // pred_region
        %s2192 = ssub.s32 %s33, 2
        // Predicated region
        $region109: #{tpu_custom_call.1} parent=107 // pred_check
          %p2193 = pneg %p464
        $region110: #{tpu_custom_call.1} parent=107 // pred_check_branch
          %2195 = sbr.rel (%p2193) target = $region112
        $region111: #{tpu_custom_call.1} parent=107 // pred_region
          %s2196 = sand.u32 %s449, 1
          %s2197 = scalar_lea.sflag [#allocation4], %s2196
          %s2198 = sand.u32 %s449, 1
          %s2199 = smul.addr %s2198, 16
          %s2200 = scalar_lea.vmem [#allocation10], %s2199
          %2201 = dma.done %s2197, 256
        $region112: #{tpu_custom_call.1} parent=107 // pred_fallthru
          _
      $region108: #{tpu_custom_call.1} parent=5 // pred_fallthru
        _
    $region6: #{tpu_custom_call.1} parent=1 // loop_footer
      %s37 = sadd.s32 1, %s33
    $region7: #{tpu_custom_call.1} parent=1 // loop_footer_branch
      %32 = sbr.rel target = $region3
    $region8: #{tpu_custom_call.1} parent=1 // loop_exit
      _
    %2202 = vsyncpa [#allocation3], 1
    %s2203 = scalar_lea.sflag [#allocation3], 1
    %2204 = vsyncpa %s2203, 1
    %2205 = vsyncpa [#allocation6], 1
    %s2206 = scalar_lea.sflag [#allocation6], 1
    %2207 = vsyncpa %s2206, 1
    %2208 = vsyncpa [#allocation9], 1
    %s2209 = scalar_lea.sflag [#allocation9], 1
    %2210 = vsyncpa %s2209, 1
    %2211 = vsyncpa [#allocation4], 1
    %s2212 = scalar_lea.sflag [#allocation4], 1
    %2213 = vsyncpa %s2212, 1

</llo_original>
